<compile_context>
chip_gen: v7x
topology: tpu7x:2x2x1
jax: 0.10.0
libtpu: 0.0.40
codegen_flags: <defaults>
</compile_context>

<pallas_src>
import math
import functools

import jax
import jax.numpy as jnp
from jax import lax
from jax.experimental import pallas as pl
from jax.experimental.pallas import tpu as pltpu

IGNORE_INDEX = 255
MAX_TILE = 4096  # hard cap on the pixel (lane) tile; VMEM budget may lower it


# ----------------------------------------------------------------------------
# helpers (plain JAX / python glue, one-shot & tiny)
# ----------------------------------------------------------------------------
def _vmem_capacity_bytes():
    try:
        info = pltpu.get_tpu_info()
        return int(getattr(info, "vmem_capacity_bytes", 64 * 1024 * 1024))
    except Exception:
        return 64 * 1024 * 1024  # v7x-safe fallback


def _pick_pixel_tile(hw, c, in_itemsize, vmem_cap):
    """Pick the pixel tile from a per-chip VMEM budget. Returns (tpix, n_tiles)."""
    budget = int(0.40 * vmem_cap)
    c_pad = max(8, -(-c // 8) * 8)
    # per pixel: 4 logits tensors x 2 pipeline buffers (input dtype)
    #            + ~10 live f32 (C, TPIX) compute intermediates
    per_pix = c_pad * (4 * 2 * in_itemsize + 10 * 4) + 16
    cap = max(128, (budget // per_pix) // 128 * 128)
    cap = min(cap, MAX_TILE)
    if hw <= cap:
        return hw, 1                       # full row block, any hw allowed
    for t in range(cap, 127, -128):        # prefer a 128-multiple divisor of hw
        if hw % t == 0:
            return t, hw // t
    return cap, -(-hw // cap)              # ragged: cdiv grid + in-kernel mask


def _sigma_table_t(weight_ca, cov_ca, half_ratio):
    """Transposed sigma2 lookup table M_T[c, l] with 0.5*ratio folded in.

    M[l, c] = 0.5*ratio * sum_a (W[c, a] - W[l, a])^2 * CV[l, a]
    """
    w = weight_ca.astype(jnp.float32)
    cv = cov_ca.astype(jnp.float32)
    t1 = cv @ (w * w).T                                 # (C, C)  [l, c]
    t2 = (w * cv) @ w.T                                 # (C, C)  [l, c]
    t3 = jnp.sum(w * w * cv, axis=1, keepdims=True)     # (C, 1)
    m = half_ratio * (t1 - 2.0 * t2 + t3)               # [l, c]
    return m.T                                          # [c, l]


# ----------------------------------------------------------------------------
# fused kernel: augmentation + pseudo labels + confidence + 4x masked CE
# ----------------------------------------------------------------------------
def _fused_loss_kernel(*refs, supervised, ignore_index, thresh, num_classes,
                       tpix, hw, ragged, mm_dtype):
    if supervised:
        gt_ref, l1_ref, l2_ref, t1_ref, t2_ref, m_ref, out_ref = refs
    else:
        l1_ref, l2_ref, t1_ref, t2_ref, m_ref, out_ref = refs
    c = num_classes
    ch_ids = lax.broadcasted_iota(jnp.int32, (c, tpix), 0)

    if ragged:  # last pixel tile overruns hw -> mask its tail out of the CE
        pix = lax.broadcasted_iota(jnp.int32, (1, tpix), 1) + pl.program_id(1) * tpix
        pix_valid = pix < hw
    else:
        pix_valid = None

    def channel_max(x):
        return jnp.max(x, axis=0, keepdims=True)

    def channel_argmax(x, x_max):
        # first-occurrence argmax (lowest matching channel index)
        return jnp.min(jnp.where(x == x_max, ch_ids, c), axis=0, keepdims=True)

    def augment(x, lbl, valid_f, m_idx):
        # sigma2[c, p] = M[lbl_p, c] via M_T (C,C) @ onehot (C,TPIX).
        # M already carries the 0.5*ratio factor; validity is folded into onehot.
        onehot = (ch_ids == lbl).astype(jnp.float32)
        if valid_f is not None:
            onehot = onehot * valid_f
        sigma2 = jnp.dot(m_ref[m_idx].astype(mm_dtype), onehot.astype(mm_dtype),
                         preferred_element_type=jnp.float32)
        return x + sigma2

    # --------------- teacher branch first (short live ranges) ---------------
    t1 = t1_ref[...].astype(jnp.float32)
    t2 = t2_ref[...].astype(jnp.float32)
    max_t1 = channel_max(t1)
    max_t2 = channel_max(t2)

    if supervised:
        gt = gt_ref[...]                                  # (1, TPIX) int32
        lbl_t1 = gt
        lbl_t2 = gt
        valid_f = ((gt != ignore_index).astype(jnp.float32)
                   if ignore_index < c else None)         # 255 >= C: onehot is 0 anyway
    else:
        lbl_t1 = channel_argmax(t1, max_t1)               # pseudo labels (unsup only)
        lbl_t2 = channel_argmax(t2, max_t2)
        valid_f = None

    # teacher confidence on ORIGINAL logits: max prob >= thresh <=> denom*thresh <= 1
    d1 = jnp.sum(jnp.exp(t1 - max_t1), axis=0, keepdims=True)
    d2 = jnp.sum(jnp.exp(t2 - max_t2), axis=0, keepdims=True)
    conf1 = d1 * thresh <= 1.0
    conf2 = d2 * thresh <= 1.0

    t1a = augment(t1, lbl_t1, valid_f, 2)
    t2a = augment(t2, lbl_t2, valid_f, 3)
    tgt1 = jnp.where(conf1, channel_argmax(t1a, channel_max(t1a)), ignore_index)
    tgt2 = jnp.where(conf2, channel_argmax(t2a, channel_max(t2a)), ignore_index)
    # t1, t2, t1a, t2a dead past this point

    # --------------------------- student branch ----------------------------
    l1 = l1_ref[...].astype(jnp.float32)
    l2 = l2_ref[...].astype(jnp.float32)
    if supervised:
        lbl_l1 = gt
        lbl_l2 = gt
    else:
        lbl_l1 = channel_argmax(l1, channel_max(l1))
        lbl_l2 = channel_argmax(l2, channel_max(l2))
    l1a = augment(l1, lbl_l1, valid_f, 0)
    l2a = augment(l2, lbl_l2, valid_f, 1)

    max_l1a = channel_max(l1a)                            # shared: argmax + lse
    max_l2a = channel_max(l2a)
    tgt11 = channel_argmax(l1a, max_l1a)                  # targets_u11
    tgt22 = channel_argmax(l2a, max_l2a)                  # targets_u22
    lse1 = jnp.log(jnp.sum(jnp.exp(l1a - max_l1a), axis=0, keepdims=True)) + max_l1a
    lse2 = jnp.log(jnp.sum(jnp.exp(l2a - max_l2a), axis=0, keepdims=True)) + max_l2a

    def lane_partial(v):      # (1, TPIX) f32 -> (1, 128) per-lane partial sums
        if tpix % 128 == 0:
            acc = v[:, 0:128]
            for i in range(1, tpix // 128):
                acc = acc + v[:, i * 128:(i + 1) * 128]   # VPU adds, no XLU
            return acc
        s = jnp.sum(v, axis=1, keepdims=True)             # small full-row tile only
        lane = lax.broadcasted_iota(jnp.int32, (1, 128), 1)
        return jnp.where(lane == 0, s, 0.0)

    def ce_partial(x, lse, tgt):
        valid = tgt != ignore_index
        if pix_valid is not None:
            valid = jnp.logical_and(valid, pix_valid)
        x_t = jnp.sum(jnp.where(ch_ids == tgt, x, 0.0), axis=0, keepdims=True)
        nll = jnp.where(valid, lse - x_t, 0.0)             # where (not *): NaN-safe
        return lane_partial(nll), lane_partial(valid.astype(jnp.float32))

    p1, n1 = ce_partial(l1a, lse1, tgt2)      # loss1  = CE(logits1, targets_u2)
    p2, n2 = ce_partial(l2a, lse2, tgt1)      # loss2  = CE(logits2, targets_u1)
    p11, n11 = ce_partial(l1a, lse1, tgt22)   # loss11 = CE(logits1, targets_u22)
    p22, n22 = ce_partial(l2a, lse2, tgt11)   # loss22 = CE(logits2, targets_u11)

    # lane-dense (8, 128) partials: rows 0..3 = nll lane-sums, rows 4..7 = counts
    out_ref[...] = jnp.concatenate([p1, p2, p11, p22, n1, n2, n11, n22], axis=0)


# ----------------------------------------------------------------------------
# full forward
# ----------------------------------------------------------------------------
def exp_semi_loss_cpsfaws7_forward(
        branch1_logits, branch1_features, conv_w1, cov1,
        branch2_logits, branch2_features, conv_w2, cov2,
        teacher1_logits, teacher1_features, t_conv_w1, t_cov1,
        teacher2_logits, teacher2_features, t_conv_w2, t_cov2,
        current_iter, gt_semantic_seg,
        *, loss_weight=1.0, loss_weight2=1.0, ignore_index=IGNORE_INDEX,
        total_iteration=1000, end_ratio=2.0, ratio_type='cosine', thresh=0.95):
    # ratio schedule computed with jnp so a traced current_iter does not retrace.
    it = jnp.asarray(current_iter, jnp.float32)
    if ratio_type == 'cosine':
        ratio = end_ratio - end_ratio * (
            jnp.cos(jnp.pi * it / float(total_iteration)) + 1.0) / 2.0
    elif ratio_type == 'line':
        ratio = end_ratio * (it / float(total_iteration))
    elif ratio_type is None:
        ratio = jnp.asarray(0.0, jnp.float32)
    else:
        raise NotImplementedError('not implemented')

    n, c, h, w = branch1_logits.shape
    hw = h * w
    sup_b = int(gt_semantic_seg.shape[0])

    # TODO(synk): scale_factor bilinear resize of logits/features not implemented
    #             (this config uses scale_factor=None, so the path is skipped).
    # TODO(synk): estimator.update(features, gt) (running per-class covariance
    #             update, no_grad) has no provided implementation; CoVariance is
    #             consumed as given and the feature maps are unused here.
    del branch1_features, branch2_features, teacher1_features, teacher2_features

    # channel-major (N, C, H*W) views of NCHW logits — free reshape, NATIVE dtype
    l1 = branch1_logits.reshape(n, c, hw)
    l2 = branch2_logits.reshape(n, c, hw)
    t1 = teacher1_logits.reshape(n, c, hw)
    t2 = teacher2_logits.reshape(n, c, hw)

    # gt: nearest resize to (h, w) if needed, then (sup_b, 1, hw) int32
    gt = gt_semantic_seg.astype(jnp.int32).reshape(
        sup_b, 1, *gt_semantic_seg.shape[-2:])
    gh, gw = gt.shape[-2:]
    if (gh, gw) != (h, w):
        ridx = (jnp.arange(h) * gh) // h
        cidx = (jnp.arange(w) * gw) // w
        gt = gt[:, :, ridx[:, None], cidx[None, :]]
    gt = gt.reshape(sup_b, 1, hw)

    # per-weight-set transposed sigma2 tables (0.5*ratio folded in), (4, C, C)
    half_ratio = 0.5 * ratio
    m_all = jnp.stack([
        _sigma_table_t(conv_w1, cov1, half_ratio),
        _sigma_table_t(conv_w2, cov2, half_ratio),
        _sigma_table_t(t_conv_w1, t_cov1, half_ratio),
        _sigma_table_t(t_conv_w2, t_cov2, half_ratio),
    ], axis=0)

    vmem_cap = _vmem_capacity_bytes()
    tpix, n_tiles = _pick_pixel_tile(hw, c, jnp.dtype(l1.dtype).itemsize, vmem_cap)
    vmem_limit = int(0.70 * vmem_cap)
    ragged = (tpix * n_tiles != hw)

    def launch(batch_lo, batch_hi, supervised):
        nb = batch_hi - batch_lo
        kern = functools.partial(
            _fused_loss_kernel, supervised=supervised, ignore_index=ignore_index,
            thresh=float(thresh), num_classes=c, tpix=tpix, hw=hw, ragged=ragged,
            mm_dtype=jnp.bfloat16 if c >= 64 else jnp.float32)
        logits_spec = pl.BlockSpec((None, c, tpix),
                                   lambda i, j: (i + batch_lo, 0, j))
        in_specs, args = [], []
        if supervised:
            in_specs.append(pl.BlockSpec((None, 1, tpix), lambda i, j: (i, 0, j)))
            args.append(gt)
        in_specs += [logits_spec] * 4
        in_specs.append(pl.BlockSpec((4, c, c), lambda i, j: (0, 0, 0)))
        args += [l1, l2, t1, t2, m_all]
        return pl.pallas_call(
            kern,
            out_shape=jax.ShapeDtypeStruct((nb, n_tiles, 8, 128), jnp.float32),
            grid=(nb, n_tiles),
            in_specs=in_specs,
            out_specs=pl.BlockSpec((None, None, 8, 128), lambda i, j: (i, j, 0, 0)),
            compiler_params=pltpu.CompilerParams(
                dimension_semantics=("parallel", "parallel"),
                vmem_limit_bytes=vmem_limit),
        )(*args)

    vals = jnp.zeros((8,), jnp.float32)
    if sup_b > 0:
        vals = vals + jnp.sum(launch(0, sup_b, True), axis=(0, 1, 3))
    if n - sup_b > 0:
        vals = vals + jnp.sum(launch(sup_b, n, False), axis=(0, 1, 3))

    # mean over non-ignored targets; 0/0 -> NaN matches F.cross_entropy when every
    # pseudo-label in a loss term is masked out (same as the PyTorch module).
    loss1 = vals[0] / vals[4]
    loss2 = vals[1] / vals[5]
    loss11 = vals[2] / vals[6]
    loss22 = vals[3] / vals[7]
    loss = (loss1 + loss2) * loss_weight + (loss11 + loss22) * loss_weight2
    return loss, ratio * jnp.ones((1,), jnp.float32)


# ----------------------------------------------------------------------------
# main
# ----------------------------------------------------------------------------
if __name__ == "__main__":
    key = jax.random.PRNGKey(0)
    ks = jax.random.split(key, 20)

    n_sup, n_unsup = 2, 2
    n = n_sup + n_unsup
    num_cls, feat_dim, h, w = 8, 32, 16, 16

    # logits / features (NCHW, as in PyTorch)
    branch1_logits = jax.random.normal(ks[0], (n, num_cls, h, w), jnp.float32)
    branch2_logits = jax.random.normal(ks[1], (n, num_cls, h, w), jnp.float32)
    teacher1_logits = 4.0 * jax.random.normal(ks[2], (n, num_cls, h, w), jnp.float32)
    teacher2_logits = 4.0 * jax.random.normal(ks[3], (n, num_cls, h, w), jnp.float32)
    branch1_features = jax.random.normal(ks[4], (n, feat_dim, h, w), jnp.float32)
    branch2_features = jax.random.normal(ks[5], (n, feat_dim, h, w), jnp.float32)
    teacher1_features = jax.random.normal(ks[6], (n, feat_dim, h, w), jnp.float32)
    teacher2_features = jax.random.normal(ks[7], (n, feat_dim, h, w), jnp.float32)

    # conv_seg 1x1 weights (C, A, 1, 1) squeezed -> (C, A)
    conv_w1 = 0.1 * jax.random.normal(ks[8], (num_cls, feat_dim), jnp.float32)
    conv_w2 = 0.1 * jax.random.normal(ks[9], (num_cls, feat_dim), jnp.float32)
    t_conv_w1 = 0.1 * jax.random.normal(ks[10], (num_cls, feat_dim), jnp.float32)
    t_conv_w2 = 0.1 * jax.random.normal(ks[11], (num_cls, feat_dim), jnp.float32)

    # estimator CoVariance per class, (num_classes, A), non-negative
    cov1 = jnp.abs(jax.random.normal(ks[12], (num_cls, feat_dim), jnp.float32))
    cov2 = jnp.abs(jax.random.normal(ks[13], (num_cls, feat_dim), jnp.float32))
    t_cov1 = jnp.abs(jax.random.normal(ks[14], (num_cls, feat_dim), jnp.float32))
    t_cov2 = jnp.abs(jax.random.normal(ks[15], (num_cls, feat_dim), jnp.float32))

    # supervised ground truth with some ignore pixels
    gt = jax.random.randint(ks[16], (n_sup, 1, h, w), 0, num_cls).astype(jnp.int32)
    ignore_mask = jax.random.uniform(ks[17], (n_sup, 1, h, w)) < 0.1
    gt = jnp.where(ignore_mask, jnp.int32(IGNORE_INDEX), gt)

    loss, ratio_arr = exp_semi_loss_cpsfaws7_forward(
        branch1_logits, branch1_features, conv_w1, cov1,
        branch2_logits, branch2_features, conv_w2, cov2,
        teacher1_logits, teacher1_features, t_conv_w1, t_cov1,
        teacher2_logits, teacher2_features, t_conv_w2, t_cov2,
        current_iter=100, gt_semantic_seg=gt,
        loss_weight=1.0, loss_weight2=1.0, ignore_index=IGNORE_INDEX,
        total_iteration=1000, end_ratio=2.0, ratio_type='cosine', thresh=0.95)

    jax.block_until_ready(loss)
    jax.block_until_ready(ratio_arr)
    print("KERNEL_OK")
</pallas_src>

<mosaic_0001>
module attributes {stable_mosaic.version = 11 : i64} {
  func.func @_fused_loss_kernel(%arg0: i32, %arg1: i32, %arg2: memref<1x1x256xi32, #tpu.memory_space<vmem>>, %arg3: memref<1x8x256xf32, #tpu.memory_space<vmem>>, %arg4: memref<1x8x256xf32, #tpu.memory_space<vmem>>, %arg5: memref<1x8x256xf32, #tpu.memory_space<vmem>>, %arg6: memref<1x8x256xf32, #tpu.memory_space<vmem>>, %arg7: memref<4x8x8xf32, #tpu.memory_space<vmem>>, %arg8: memref<1x1x8x128xf32, #tpu.memory_space<vmem>>) attributes {dimension_semantics = [#tpu.dimension_semantics<parallel>, #tpu.dimension_semantics<parallel>], iteration_bounds = array<i64: 2, 1>, scalar_prefetch = 0 : i64, scratch_operands = 0 : i64, tpu.core_type = #tpu.core_type<tc>, window_params = [{transform_indices = @transform_0, window_bounds = array<i64: 1, 1, 256>}, {transform_indices = @transform_1, window_bounds = array<i64: 1, 8, 256>}, {transform_indices = @transform_2, window_bounds = array<i64: 1, 8, 256>}, {transform_indices = @transform_3, window_bounds = array<i64: 1, 8, 256>}, {transform_indices = @transform_4, window_bounds = array<i64: 1, 8, 256>}, {pipeline_mode = #tpu.pipeline_mode<synchronous>, transform_indices = @transform_5, window_bounds = array<i64: 4, 8, 8>}, {transform_indices = @transform_6, window_bounds = array<i64: 1, 1, 8, 128>}]} {
    %0 = tpu.iota {dimensions = array<i32: 0>} : vector<8x256xi32>
    %c0 = arith.constant 0 : index
    %c0_0 = arith.constant 0 : index
    %c0_1 = arith.constant 0 : index
    %1 = vector.load %arg5[%c0, %c0_0, %c0_1] : memref<1x8x256xf32, #tpu.memory_space<vmem>>, vector<1x8x256xf32>
    %2 = vector.shape_cast %1 : vector<1x8x256xf32> to vector<8x256xf32>
    %c0_2 = arith.constant 0 : index
    %c0_3 = arith.constant 0 : index
    %c0_4 = arith.constant 0 : index
    %3 = vector.load %arg6[%c0_2, %c0_3, %c0_4] : memref<1x8x256xf32, #tpu.memory_space<vmem>>, vector<1x8x256xf32>
    %4 = vector.shape_cast %3 : vector<1x8x256xf32> to vector<8x256xf32>
    %cst = arith.constant dense<0xFF800000> : vector<256xf32>
    %5 = vector.multi_reduction <maximumf>, %2, %cst [0] : vector<8x256xf32> to vector<256xf32>
    %6 = vector.shape_cast %5 : vector<256xf32> to vector<1x256xf32>
    %cst_5 = arith.constant dense<0xFF800000> : vector<256xf32>
    %7 = vector.multi_reduction <maximumf>, %4, %cst_5 [0] : vector<8x256xf32> to vector<256xf32>
    %8 = vector.shape_cast %7 : vector<256xf32> to vector<1x256xf32>
    %c0_6 = arith.constant 0 : index
    %c0_7 = arith.constant 0 : index
    %c0_8 = arith.constant 0 : index
    %9 = vector.load %arg2[%c0_6, %c0_7, %c0_8] : memref<1x1x256xi32, #tpu.memory_space<vmem>>, vector<1x1x256xi32>
    %10 = vector.shape_cast %9 : vector<1x1x256xi32> to vector<1x256xi32>
    %11 = vector.broadcast %6 : vector<1x256xf32> to vector<8x256xf32>
    %12 = arith.subf %2, %11 : vector<8x256xf32>
    %13 = math.exp %12 : vector<8x256xf32>
    %cst_9 = arith.constant dense<0.000000e+00> : vector<256xf32>
    %14 = vector.multi_reduction <add>, %13, %cst_9 [0] : vector<8x256xf32> to vector<256xf32>
    %15 = vector.shape_cast %14 : vector<256xf32> to vector<1x256xf32>
    %16 = vector.broadcast %8 : vector<1x256xf32> to vector<8x256xf32>
    %17 = arith.subf %4, %16 : vector<8x256xf32>
    %18 = math.exp %17 : vector<8x256xf32>
    %cst_10 = arith.constant dense<0.000000e+00> : vector<256xf32>
    %19 = vector.multi_reduction <add>, %18, %cst_10 [0] : vector<8x256xf32> to vector<256xf32>
    %20 = vector.shape_cast %19 : vector<256xf32> to vector<1x256xf32>
    %cst_11 = arith.constant 0.949999988 : f32
    %21 = vector.broadcast %cst_11 : f32 to vector<1x256xf32>
    %22 = arith.mulf %15, %21 : vector<1x256xf32>
    %cst_12 = arith.constant 1.000000e+00 : f32
    %23 = vector.broadcast %cst_12 : f32 to vector<1x256xf32>
    %24 = arith.cmpf ole, %22, %23 : vector<1x256xf32>
    %cst_13 = arith.constant 0.949999988 : f32
    %25 = vector.broadcast %cst_13 : f32 to vector<1x256xf32>
    %26 = arith.mulf %20, %25 : vector<1x256xf32>
    %cst_14 = arith.constant 1.000000e+00 : f32
    %27 = vector.broadcast %cst_14 : f32 to vector<1x256xf32>
    %28 = arith.cmpf ole, %26, %27 : vector<1x256xf32>
    %29 = vector.broadcast %10 : vector<1x256xi32> to vector<8x256xi32>
    %30 = arith.cmpi eq, %0, %29 : vector<8x256xi32>
    %31 = arith.extui %30 : vector<8x256xi1> to vector<8x256xi32>
    %32 = arith.sitofp %31 : vector<8x256xi32> to vector<8x256xf32>
    %c2 = arith.constant 2 : index
    %c0_15 = arith.constant 0 : index
    %c0_16 = arith.constant 0 : index
    %33 = vector.load %arg7[%c2, %c0_15, %c0_16] : memref<4x8x8xf32, #tpu.memory_space<vmem>>, vector<1x8x8xf32>
    %34 = vector.shape_cast %33 : vector<1x8x8xf32> to vector<8x8xf32>
    %cst_17 = arith.constant dense<0.000000e+00> : vector<8x256xf32>
    %35 = tpu.matmul %34, %32, %cst_17 {dimension_numbers = #tpu.dot_dimension_numbers<[1], [0], [0], [1], [0, 0, 1, 1], [], []>} : vector<8x8xf32>, vector<8x256xf32>, vector<8x256xf32> -> vector<8x256xf32>
    %36 = arith.addf %2, %35 : vector<8x256xf32>
    %37 = vector.broadcast %10 : vector<1x256xi32> to vector<8x256xi32>
    %38 = arith.cmpi eq, %0, %37 : vector<8x256xi32>
    %39 = arith.extui %38 : vector<8x256xi1> to vector<8x256xi32>
    %40 = arith.sitofp %39 : vector<8x256xi32> to vector<8x256xf32>
    %c3 = arith.constant 3 : index
    %c0_18 = arith.constant 0 : index
    %c0_19 = arith.constant 0 : index
    %41 = vector.load %arg7[%c3, %c0_18, %c0_19] : memref<4x8x8xf32, #tpu.memory_space<vmem>>, vector<1x8x8xf32>
    %42 = vector.shape_cast %41 : vector<1x8x8xf32> to vector<8x8xf32>
    %cst_20 = arith.constant dense<0.000000e+00> : vector<8x256xf32>
    %43 = tpu.matmul %42, %40, %cst_20 {dimension_numbers = #tpu.dot_dimension_numbers<[1], [0], [0], [1], [0, 0, 1, 1], [], []>} : vector<8x8xf32>, vector<8x256xf32>, vector<8x256xf32> -> vector<8x256xf32>
    %44 = arith.addf %4, %43 : vector<8x256xf32>
    %cst_21 = arith.constant dense<0xFF800000> : vector<256xf32>
    %45 = vector.multi_reduction <maximumf>, %36, %cst_21 [0] : vector<8x256xf32> to vector<256xf32>
    %46 = vector.shape_cast %45 : vector<256xf32> to vector<1x256xf32>
    %47 = vector.broadcast %46 : vector<1x256xf32> to vector<8x256xf32>
    %48 = arith.cmpf oeq, %36, %47 : vector<8x256xf32>
    %c8_i32 = arith.constant 8 : i32
    %49 = vector.broadcast %c8_i32 : i32 to vector<8x256xi32>
    %50 = arith.select %48, %0, %49 : vector<8x256xi1>, vector<8x256xi32>
    %cst_22 = arith.constant dense<2147483647> : vector<256xi32>
    %51 = vector.multi_reduction <minsi>, %50, %cst_22 [0] : vector<8x256xi32> to vector<256xi32>
    %52 = vector.shape_cast %51 : vector<256xi32> to vector<1x256xi32>
    %c255_i32 = arith.constant 255 : i32
    %53 = vector.broadcast %c255_i32 : i32 to vector<1x256xi32>
    %54 = arith.select %24, %52, %53 : vector<1x256xi1>, vector<1x256xi32>
    %cst_23 = arith.constant dense<0xFF800000> : vector<256xf32>
    %55 = vector.multi_reduction <maximumf>, %44, %cst_23 [0] : vector<8x256xf32> to vector<256xf32>
    %56 = vector.shape_cast %55 : vector<256xf32> to vector<1x256xf32>
    %57 = vector.broadcast %56 : vector<1x256xf32> to vector<8x256xf32>
    %58 = arith.cmpf oeq, %44, %57 : vector<8x256xf32>
    %c8_i32_24 = arith.constant 8 : i32
    %59 = vector.broadcast %c8_i32_24 : i32 to vector<8x256xi32>
    %60 = arith.select %58, %0, %59 : vector<8x256xi1>, vector<8x256xi32>
    %cst_25 = arith.constant dense<2147483647> : vector<256xi32>
    %61 = vector.multi_reduction <minsi>, %60, %cst_25 [0] : vector<8x256xi32> to vector<256xi32>
    %62 = vector.shape_cast %61 : vector<256xi32> to vector<1x256xi32>
    %c255_i32_26 = arith.constant 255 : i32
    %63 = vector.broadcast %c255_i32_26 : i32 to vector<1x256xi32>
    %64 = arith.select %28, %62, %63 : vector<1x256xi1>, vector<1x256xi32>
    %c0_27 = arith.constant 0 : index
    %c0_28 = arith.constant 0 : index
    %c0_29 = arith.constant 0 : index
    %65 = vector.load %arg3[%c0_27, %c0_28, %c0_29] : memref<1x8x256xf32, #tpu.memory_space<vmem>>, vector<1x8x256xf32>
    %66 = vector.shape_cast %65 : vector<1x8x256xf32> to vector<8x256xf32>
    %c0_30 = arith.constant 0 : index
    %c0_31 = arith.constant 0 : index
    %c0_32 = arith.constant 0 : index
    %67 = vector.load %arg4[%c0_30, %c0_31, %c0_32] : memref<1x8x256xf32, #tpu.memory_space<vmem>>, vector<1x8x256xf32>
    %68 = vector.shape_cast %67 : vector<1x8x256xf32> to vector<8x256xf32>
    %69 = vector.broadcast %10 : vector<1x256xi32> to vector<8x256xi32>
    %70 = arith.cmpi eq, %0, %69 : vector<8x256xi32>
    %71 = arith.extui %70 : vector<8x256xi1> to vector<8x256xi32>
    %72 = arith.sitofp %71 : vector<8x256xi32> to vector<8x256xf32>
    %c0_33 = arith.constant 0 : index
    %c0_34 = arith.constant 0 : index
    %c0_35 = arith.constant 0 : index
    %73 = vector.load %arg7[%c0_33, %c0_34, %c0_35] : memref<4x8x8xf32, #tpu.memory_space<vmem>>, vector<1x8x8xf32>
    %74 = vector.shape_cast %73 : vector<1x8x8xf32> to vector<8x8xf32>
    %cst_36 = arith.constant dense<0.000000e+00> : vector<8x256xf32>
    %75 = tpu.matmul %74, %72, %cst_36 {dimension_numbers = #tpu.dot_dimension_numbers<[1], [0], [0], [1], [0, 0, 1, 1], [], []>} : vector<8x8xf32>, vector<8x256xf32>, vector<8x256xf32> -> vector<8x256xf32>
    %76 = arith.addf %66, %75 : vector<8x256xf32>
    %77 = vector.broadcast %10 : vector<1x256xi32> to vector<8x256xi32>
    %78 = arith.cmpi eq, %0, %77 : vector<8x256xi32>
    %79 = arith.extui %78 : vector<8x256xi1> to vector<8x256xi32>
    %80 = arith.sitofp %79 : vector<8x256xi32> to vector<8x256xf32>
    %c1 = arith.constant 1 : index
    %c0_37 = arith.constant 0 : index
    %c0_38 = arith.constant 0 : index
    %81 = vector.load %arg7[%c1, %c0_37, %c0_38] : memref<4x8x8xf32, #tpu.memory_space<vmem>>, vector<1x8x8xf32>
    %82 = vector.shape_cast %81 : vector<1x8x8xf32> to vector<8x8xf32>
    %cst_39 = arith.constant dense<0.000000e+00> : vector<8x256xf32>
    %83 = tpu.matmul %82, %80, %cst_39 {dimension_numbers = #tpu.dot_dimension_numbers<[1], [0], [0], [1], [0, 0, 1, 1], [], []>} : vector<8x8xf32>, vector<8x256xf32>, vector<8x256xf32> -> vector<8x256xf32>
    %84 = arith.addf %68, %83 : vector<8x256xf32>
    %cst_40 = arith.constant dense<0xFF800000> : vector<256xf32>
    %85 = vector.multi_reduction <maximumf>, %76, %cst_40 [0] : vector<8x256xf32> to vector<256xf32>
    %86 = vector.shape_cast %85 : vector<256xf32> to vector<1x256xf32>
    %cst_41 = arith.constant dense<0xFF800000> : vector<256xf32>
    %87 = vector.multi_reduction <maximumf>, %84, %cst_41 [0] : vector<8x256xf32> to vector<256xf32>
    %88 = vector.shape_cast %87 : vector<256xf32> to vector<1x256xf32>
    %89 = vector.broadcast %86 : vector<1x256xf32> to vector<8x256xf32>
    %90 = arith.cmpf oeq, %76, %89 : vector<8x256xf32>
    %c8_i32_42 = arith.constant 8 : i32
    %91 = vector.broadcast %c8_i32_42 : i32 to vector<8x256xi32>
    %92 = arith.select %90, %0, %91 : vector<8x256xi1>, vector<8x256xi32>
    %cst_43 = arith.constant dense<2147483647> : vector<256xi32>
    %93 = vector.multi_reduction <minsi>, %92, %cst_43 [0] : vector<8x256xi32> to vector<256xi32>
    %94 = vector.shape_cast %93 : vector<256xi32> to vector<1x256xi32>
    %95 = vector.broadcast %88 : vector<1x256xf32> to vector<8x256xf32>
    %96 = arith.cmpf oeq, %84, %95 : vector<8x256xf32>
    %c8_i32_44 = arith.constant 8 : i32
    %97 = vector.broadcast %c8_i32_44 : i32 to vector<8x256xi32>
    %98 = arith.select %96, %0, %97 : vector<8x256xi1>, vector<8x256xi32>
    %cst_45 = arith.constant dense<2147483647> : vector<256xi32>
    %99 = vector.multi_reduction <minsi>, %98, %cst_45 [0] : vector<8x256xi32> to vector<256xi32>
    %100 = vector.shape_cast %99 : vector<256xi32> to vector<1x256xi32>
    %101 = vector.broadcast %86 : vector<1x256xf32> to vector<8x256xf32>
    %102 = arith.subf %76, %101 : vector<8x256xf32>
    %103 = math.exp %102 : vector<8x256xf32>
    %cst_46 = arith.constant dense<0.000000e+00> : vector<256xf32>
    %104 = vector.multi_reduction <add>, %103, %cst_46 [0] : vector<8x256xf32> to vector<256xf32>
    %105 = vector.shape_cast %104 : vector<256xf32> to vector<1x256xf32>
    %106 = math.log %105 : vector<1x256xf32>
    %107 = arith.addf %106, %86 : vector<1x256xf32>
    %108 = vector.broadcast %88 : vector<1x256xf32> to vector<8x256xf32>
    %109 = arith.subf %84, %108 : vector<8x256xf32>
    %110 = math.exp %109 : vector<8x256xf32>
    %cst_47 = arith.constant dense<0.000000e+00> : vector<256xf32>
    %111 = vector.multi_reduction <add>, %110, %cst_47 [0] : vector<8x256xf32> to vector<256xf32>
    %112 = vector.shape_cast %111 : vector<256xf32> to vector<1x256xf32>
    %113 = math.log %112 : vector<1x256xf32>
    %114 = arith.addf %113, %88 : vector<1x256xf32>
    %c255_i32_48 = arith.constant 255 : i32
    %115 = vector.broadcast %c255_i32_48 : i32 to vector<1x256xi32>
    %116 = arith.cmpi ne, %64, %115 : vector<1x256xi32>
    %117 = vector.broadcast %64 : vector<1x256xi32> to vector<8x256xi32>
    %118 = arith.cmpi eq, %0, %117 : vector<8x256xi32>
    %cst_49 = arith.constant 0.000000e+00 : f32
    %119 = vector.broadcast %cst_49 : f32 to vector<8x256xf32>
    %120 = arith.select %118, %76, %119 : vector<8x256xi1>, vector<8x256xf32>
    %cst_50 = arith.constant dense<0.000000e+00> : vector<256xf32>
    %121 = vector.multi_reduction <add>, %120, %cst_50 [0] : vector<8x256xf32> to vector<256xf32>
    %122 = vector.shape_cast %121 : vector<256xf32> to vector<1x256xf32>
    %123 = arith.subf %107, %122 : vector<1x256xf32>
    %cst_51 = arith.constant 0.000000e+00 : f32
    %124 = vector.broadcast %cst_51 : f32 to vector<1x256xf32>
    %125 = arith.select %116, %123, %124 : vector<1x256xi1>, vector<1x256xf32>
    %126 = vector.extract_strided_slice %125 {offsets = [0, 0], sizes = [1, 128], strides = [1, 1]} : vector<1x256xf32> to vector<1x128xf32>
    %127 = vector.extract_strided_slice %125 {offsets = [0, 128], sizes = [1, 128], strides = [1, 1]} : vector<1x256xf32> to vector<1x128xf32>
    %128 = arith.addf %126, %127 : vector<1x128xf32>
    %129 = arith.extui %116 : vector<1x256xi1> to vector<1x256xi32>
    %130 = arith.sitofp %129 : vector<1x256xi32> to vector<1x256xf32>
    %131 = vector.extract_strided_slice %130 {offsets = [0, 0], sizes = [1, 128], strides = [1, 1]} : vector<1x256xf32> to vector<1x128xf32>
    %132 = vector.extract_strided_slice %130 {offsets = [0, 128], sizes = [1, 128], strides = [1, 1]} : vector<1x256xf32> to vector<1x128xf32>
    %133 = arith.addf %131, %132 : vector<1x128xf32>
    %c255_i32_52 = arith.constant 255 : i32
    %134 = vector.broadcast %c255_i32_52 : i32 to vector<1x256xi32>
    %135 = arith.cmpi ne, %54, %134 : vector<1x256xi32>
    %136 = vector.broadcast %54 : vector<1x256xi32> to vector<8x256xi32>
    %137 = arith.cmpi eq, %0, %136 : vector<8x256xi32>
    %cst_53 = arith.constant 0.000000e+00 : f32
    %138 = vector.broadcast %cst_53 : f32 to vector<8x256xf32>
    %139 = arith.select %137, %84, %138 : vector<8x256xi1>, vector<8x256xf32>
    %cst_54 = arith.constant dense<0.000000e+00> : vector<256xf32>
    %140 = vector.multi_reduction <add>, %139, %cst_54 [0] : vector<8x256xf32> to vector<256xf32>
    %141 = vector.shape_cast %140 : vector<256xf32> to vector<1x256xf32>
    %142 = arith.subf %114, %141 : vector<1x256xf32>
    %cst_55 = arith.constant 0.000000e+00 : f32
    %143 = vector.broadcast %cst_55 : f32 to vector<1x256xf32>
    %144 = arith.select %135, %142, %143 : vector<1x256xi1>, vector<1x256xf32>
    %145 = vector.extract_strided_slice %144 {offsets = [0, 0], sizes = [1, 128], strides = [1, 1]} : vector<1x256xf32> to vector<1x128xf32>
    %146 = vector.extract_strided_slice %144 {offsets = [0, 128], sizes = [1, 128], strides = [1, 1]} : vector<1x256xf32> to vector<1x128xf32>
    %147 = arith.addf %145, %146 : vector<1x128xf32>
    %148 = arith.extui %135 : vector<1x256xi1> to vector<1x256xi32>
    %149 = arith.sitofp %148 : vector<1x256xi32> to vector<1x256xf32>
    %150 = vector.extract_strided_slice %149 {offsets = [0, 0], sizes = [1, 128], strides = [1, 1]} : vector<1x256xf32> to vector<1x128xf32>
    %151 = vector.extract_strided_slice %149 {offsets = [0, 128], sizes = [1, 128], strides = [1, 1]} : vector<1x256xf32> to vector<1x128xf32>
    %152 = arith.addf %150, %151 : vector<1x128xf32>
    %c255_i32_56 = arith.constant 255 : i32
    %153 = vector.broadcast %c255_i32_56 : i32 to vector<1x256xi32>
    %154 = arith.cmpi ne, %100, %153 : vector<1x256xi32>
    %155 = vector.broadcast %100 : vector<1x256xi32> to vector<8x256xi32>
    %156 = arith.cmpi eq, %0, %155 : vector<8x256xi32>
    %cst_57 = arith.constant 0.000000e+00 : f32
    %157 = vector.broadcast %cst_57 : f32 to vector<8x256xf32>
    %158 = arith.select %156, %76, %157 : vector<8x256xi1>, vector<8x256xf32>
    %cst_58 = arith.constant dense<0.000000e+00> : vector<256xf32>
    %159 = vector.multi_reduction <add>, %158, %cst_58 [0] : vector<8x256xf32> to vector<256xf32>
    %160 = vector.shape_cast %159 : vector<256xf32> to vector<1x256xf32>
    %161 = arith.subf %107, %160 : vector<1x256xf32>
    %cst_59 = arith.constant 0.000000e+00 : f32
    %162 = vector.broadcast %cst_59 : f32 to vector<1x256xf32>
    %163 = arith.select %154, %161, %162 : vector<1x256xi1>, vector<1x256xf32>
    %164 = vector.extract_strided_slice %163 {offsets = [0, 0], sizes = [1, 128], strides = [1, 1]} : vector<1x256xf32> to vector<1x128xf32>
    %165 = vector.extract_strided_slice %163 {offsets = [0, 128], sizes = [1, 128], strides = [1, 1]} : vector<1x256xf32> to vector<1x128xf32>
    %166 = arith.addf %164, %165 : vector<1x128xf32>
    %167 = arith.extui %154 : vector<1x256xi1> to vector<1x256xi32>
    %168 = arith.sitofp %167 : vector<1x256xi32> to vector<1x256xf32>
    %169 = vector.extract_strided_slice %168 {offsets = [0, 0], sizes = [1, 128], strides = [1, 1]} : vector<1x256xf32> to vector<1x128xf32>
    %170 = vector.extract_strided_slice %168 {offsets = [0, 128], sizes = [1, 128], strides = [1, 1]} : vector<1x256xf32> to vector<1x128xf32>
    %171 = arith.addf %169, %170 : vector<1x128xf32>
    %c255_i32_60 = arith.constant 255 : i32
    %172 = vector.broadcast %c255_i32_60 : i32 to vector<1x256xi32>
    %173 = arith.cmpi ne, %94, %172 : vector<1x256xi32>
    %174 = vector.broadcast %94 : vector<1x256xi32> to vector<8x256xi32>
    %175 = arith.cmpi eq, %0, %174 : vector<8x256xi32>
    %cst_61 = arith.constant 0.000000e+00 : f32
    %176 = vector.broadcast %cst_61 : f32 to vector<8x256xf32>
    %177 = arith.select %175, %84, %176 : vector<8x256xi1>, vector<8x256xf32>
    %cst_62 = arith.constant dense<0.000000e+00> : vector<256xf32>
    %178 = vector.multi_reduction <add>, %177, %cst_62 [0] : vector<8x256xf32> to vector<256xf32>
    %179 = vector.shape_cast %178 : vector<256xf32> to vector<1x256xf32>
    %180 = arith.subf %114, %179 : vector<1x256xf32>
    %cst_63 = arith.constant 0.000000e+00 : f32
    %181 = vector.broadcast %cst_63 : f32 to vector<1x256xf32>
    %182 = arith.select %173, %180, %181 : vector<1x256xi1>, vector<1x256xf32>
    %183 = vector.extract_strided_slice %182 {offsets = [0, 0], sizes = [1, 128], strides = [1, 1]} : vector<1x256xf32> to vector<1x128xf32>
    %184 = vector.extract_strided_slice %182 {offsets = [0, 128], sizes = [1, 128], strides = [1, 1]} : vector<1x256xf32> to vector<1x128xf32>
    %185 = arith.addf %183, %184 : vector<1x128xf32>
    %186 = arith.extui %173 : vector<1x256xi1> to vector<1x256xi32>
    %187 = arith.sitofp %186 : vector<1x256xi32> to vector<1x256xf32>
    %188 = vector.extract_strided_slice %187 {offsets = [0, 0], sizes = [1, 128], strides = [1, 1]} : vector<1x256xf32> to vector<1x128xf32>
    %189 = vector.extract_strided_slice %187 {offsets = [0, 128], sizes = [1, 128], strides = [1, 1]} : vector<1x256xf32> to vector<1x128xf32>
    %190 = arith.addf %188, %189 : vector<1x128xf32>
    %191 = tpu.concatenate %128, %147, %166, %185, %133, %152, %171, %190 in 0 : vector<1x128xf32>, vector<1x128xf32>, vector<1x128xf32>, vector<1x128xf32>, vector<1x128xf32>, vector<1x128xf32>, vector<1x128xf32>, vector<1x128xf32> -> vector<8x128xf32>
    %c0_64 = arith.constant 0 : index
    %c0_65 = arith.constant 0 : index
    %c0_66 = arith.constant 0 : index
    %c0_67 = arith.constant 0 : index
    %192 = vector.load %arg8[%c0_64, %c0_65, %c0_66, %c0_67] : memref<1x1x8x128xf32, #tpu.memory_space<vmem>>, vector<1x1x8x128xf32>
    %193 = vector.shape_cast %192 : vector<1x1x8x128xf32> to vector<8x128xf32>
    %194 = vector.shape_cast %191 : vector<8x128xf32> to vector<1x1x8x128xf32>
    tpu.vector_store %arg8[%c0_64, %c0_65, %c0_66, %c0_67], %194 {strides = array<i32>} : memref<1x1x8x128xf32, #tpu.memory_space<vmem>>, vector<1x1x8x128xf32>,
    return
  }
  func.func @transform_0(%arg0: i32, %arg1: i32) -> (i32, i32, i32) {
    %c0_i32 = arith.constant 0 : i32
    %c0_i32_0 = arith.constant 0 : i32
    return %arg0, %c0_i32, %arg1 : i32, i32, i32
  }
  func.func @transform_1(%arg0: i32, %arg1: i32) -> (i32, i32, i32) {
    %c0_i32 = arith.constant 0 : i32
    %0 = arith.addi %arg0, %c0_i32 : i32
    %c0_i32_0 = arith.constant 0 : i32
    %c0_i32_1 = arith.constant 0 : i32
    return %0, %c0_i32_0, %arg1 : i32, i32, i32
  }
  func.func @transform_2(%arg0: i32, %arg1: i32) -> (i32, i32, i32) {
    %c0_i32 = arith.constant 0 : i32
    %0 = arith.addi %arg0, %c0_i32 : i32
    %c0_i32_0 = arith.constant 0 : i32
    %c0_i32_1 = arith.constant 0 : i32
    return %0, %c0_i32_0, %arg1 : i32, i32, i32
  }
  func.func @transform_3(%arg0: i32, %arg1: i32) -> (i32, i32, i32) {
    %c0_i32 = arith.constant 0 : i32
    %0 = arith.addi %arg0, %c0_i32 : i32
    %c0_i32_0 = arith.constant 0 : i32
    %c0_i32_1 = arith.constant 0 : i32
    return %0, %c0_i32_0, %arg1 : i32, i32, i32
  }
  func.func @transform_4(%arg0: i32, %arg1: i32) -> (i32, i32, i32) {
    %c0_i32 = arith.constant 0 : i32
    %0 = arith.addi %arg0, %c0_i32 : i32
    %c0_i32_0 = arith.constant 0 : i32
    %c0_i32_1 = arith.constant 0 : i32
    return %0, %c0_i32_0, %arg1 : i32, i32, i32
  }
  func.func @transform_5(%arg0: i32, %arg1: i32) -> (i32, i32, i32) {
    %c0_i32 = arith.constant 0 : i32
    %c0_i32_0 = arith.constant 0 : i32
    %c0_i32_1 = arith.constant 0 : i32
    %c0_i32_2 = arith.constant 0 : i32
    return %c0_i32, %c0_i32_0, %c0_i32_1 : i32, i32, i32
  }
  func.func @transform_6(%arg0: i32, %arg1: i32) -> (i32, i32, i32, i32) {
    %c0_i32 = arith.constant 0 : i32
    %c0_i32_0 = arith.constant 0 : i32
    %c0_i32_1 = arith.constant 0 : i32
    return %arg0, %arg1, %c0_i32, %c0_i32_0 : i32, i32, i32, i32
  }
}

</mosaic_0001>

<llo_original>
// kernel: tpu_custom_call.1
$region0: #{tpu_custom_call.1}
  #allocation0 [shape = 'u32[]', space=smem, size = 0x4, offset = 0x4, fixed_abs, tag = 'smem constant byte address 0x4 - core index']
  #allocation1 [shape = 'u32[144,128]{1,0:T(1,128)}', space=vmem, size = 0x12000, scoped, tag = 'internal scratch']
  %s0 = inlined_call_operand.hbm [shape: s32[2,1,256], index: 0, kind: input, shape index: {}]
  %s1 = inlined_call_operand.hbm [shape: f32[4,8,256], index: 1, kind: input, shape index: {}]
  %s2 = inlined_call_operand.hbm [shape: f32[4,8,256], index: 2, kind: input, shape index: {}]
  %s3 = inlined_call_operand.hbm [shape: f32[4,8,256], index: 3, kind: input, shape index: {}]
  %s4 = inlined_call_operand.hbm [shape: f32[4,8,256], index: 4, kind: input, shape index: {}]
  %s5 = inlined_call_operand.hbm [shape: f32[4,8,8], index: 5, kind: input, shape index: {}]
  %s6 = inlined_call_operand.hbm [shape: f32[2,1,8,128], index: 6, kind: output, shape index: {}]
  %s7 = sld [smem:[#allocation0]]
  $region81: #{tpu_custom_call.1} parent=0
    _
  %s9 = ssub.s32 1, %s7
  %s10 = scalar_select 0, %s9, %s7
  $region1: #{tpu_custom_call.1} parent=0
    #allocation2 [shape = 'u8[2048]{0}', space=vmem, size = 0x800, scoped, tag = 'input window, operand 0']
    #allocation3 [shape = 's32[2]{0}', space=sflag, size = 0x8, scoped, tag = 'scoped memory for tpu_custom_call.1']
    #allocation4 [shape = 's32[2]{0}', space=sflag, size = 0x8, scoped, tag = 'scoped memory for tpu_custom_call.1']
    #allocation5 [shape = 'u8[16384]{0}', space=vmem, size = 0x4000, scoped, tag = 'input window, operand 1']
    #allocation6 [shape = 's32[2]{0}', space=sflag, size = 0x8, scoped, tag = 'scoped memory for tpu_custom_call.1']
    #allocation7 [shape = 'u8[16384]{0}', space=vmem, size = 0x4000, scoped, tag = 'input window, operand 2']
    #allocation8 [shape = 'u8[16384]{0}', space=vmem, size = 0x4000, scoped, tag = 'input window, operand 3']
    #allocation9 [shape = 's32[2]{0}', space=sflag, size = 0x8, scoped, tag = 'scoped memory for tpu_custom_call.1']
    #allocation10 [shape = 'u8[16384]{0}', space=vmem, size = 0x4000, scoped, tag = 'input window, operand 4']
    #allocation11 [shape = 'u8[16384]{0}', space=vmem, size = 0x4000, scoped, tag = 'input window, operand 5, single buffered']
    #allocation12 [shape = 's32[1]{0}', space=sflag, size = 0x4, scoped, tag = 'scoped memory for tpu_custom_call.1']
    #allocation13 [shape = 'u8[8192]{0}', space=vmem, size = 0x2000, scoped, tag = 'output window, operand 0']
    %11 = vsyncpa [#allocation3], 0
    %s12 = scalar_lea.sflag [#allocation3], 1
    %13 = vsyncpa %s12, 0
    %14 = vsyncpa [#allocation6], 0
    %s15 = scalar_lea.sflag [#allocation6], 1
    %16 = vsyncpa %s15, 0
    %17 = vsyncpa [#allocation9], 0
    %s18 = scalar_lea.sflag [#allocation9], 1
    %19 = vsyncpa %s18, 0
    %20 = vsyncpa [#allocation12], 0
    %21 = vsyncpa [#allocation4], 0
    %s22 = scalar_lea.sflag [#allocation4], 1
    %23 = vsyncpa %s22, 0
    loop: start=0, step=1, limit=4
    $region2: #{tpu_custom_call.1} parent=1 // loop_pre_header
      _
    $region3: #{tpu_custom_call.1} parent=1 // loop_header
      %s25 = sphi 0, %s29
      %p26 = scmp.ge.s32.totalorder %s25, 4
      %s32 = sphi 0, %s44
      %s33 = sphi 0, %s40
      %s34 = sphi 0, %s32
      %s35 = sphi 0, %s33
      %s36 = sphi 0, %s34
      %s37 = sphi 0, %s35
      %s49 = sphi 0, %s51
      %s52 = sphi 0, %s49
      %s53 = sphi 0, %s52
      %s69 = sphi 0, %s53
      %s77 = sphi 0, %s79
      %s80 = sphi 0, %s77
      %s81 = sphi 0, %s80
      %s97 = sphi 0, %s81
      %s105 = sphi 0, %s107
      %s108 = sphi 0, %s105
      %s109 = sphi 0, %s108
      %s125 = sphi 0, %s109
      %s133 = sphi 0, %s135
      %s136 = sphi 0, %s133
      %s137 = sphi 0, %s136
      %s153 = sphi 0, %s137
      %s161 = sphi 0, %s163
      %s164 = sphi 0, %s161
      %s165 = sphi 0, %s164
      %s181 = sphi 0, %s165
      %s185 = sphi 0, %s185
      %s187 = sphi 0, %s185
      %s188 = sphi 0, %s187
      %s202 = sphi 0, %s188
      %s210 = sphi 0, %s212
      %s213 = sphi 0, %s210
      %s214 = sphi 0, %s213
      %s230 = sphi 0, %s214
    $region4: #{tpu_custom_call.1} parent=1 // loop_header_branch
      %28 = sbr.rel (%p26) target = $region8
    $region5: #{tpu_custom_call.1} parent=1 // loop_body
      %s30 = ssub.s32 %s25, 1
      %s31 = ssub.s32 %s25, 2
      %s38 = sadd.s32 1, %s33
      %p39 = scmp.ge.s32.totalorder %s38, 1
      %s40 = scalar_select %p39, 0, %s38
      %s41 = sadd.s32 1, %s32
      %s42 = scalar_select %p39, %s41, %s32
      %p43 = scmp.ge.s32.totalorder %s42, 2
      %s44 = scalar_select %p43, 0, %s42
      %s45 = ssub.s32 %s32, %s44
      %s46 = ssub.s32 %s33, %s40
      %s47 = sor.u32 %s45, %s46
      %p48 = scmp.eq.s32.totalorder %s47, 0
      %s50 = sadd.s32 %s49, 1
      %s51 = scalar_select %p48, %s49, %s50
      %p54 = pneg %p48
      %p55 = scmp.eq.s32.totalorder %s25, 1
      %p56 = por %p54, %p55
      %p57 = scmp.ne.s32.totalorder %s49, %s52
      %p58 = scmp.eq.s32.totalorder %s25, 0
      %p59 = por %p57, %p58
      %p60 = scmp.ne.s32.totalorder %s49, %s52
      %p61 = scmp.eq.s32.totalorder %s30, 1
      %p62 = por %p60, %p61
      %p63 = scmp.ne.s32.totalorder %s52, %s53
      %p64 = scmp.eq.s32.totalorder %s30, 0
      %p65 = por %p63, %p64
      %p66 = scmp.ne.s32.totalorder %s52, %s53
      %p67 = scmp.eq.s32.totalorder %s31, 1
      %p68 = por %p66, %p67
      %p70 = scmp.ne.s32.totalorder %s53, %s69
      %p71 = scmp.eq.s32.totalorder %s31, 0
      %p72 = por %p70, %p71
      %s73 = ssub.s32 %s32, %s44
      %s74 = ssub.s32 %s33, %s40
      %s75 = sor.u32 %s73, %s74
      %p76 = scmp.eq.s32.totalorder %s75, 0
      %s78 = sadd.s32 %s77, 1
      %s79 = scalar_select %p76, %s77, %s78
      %p82 = pneg %p76
      %p83 = scmp.eq.s32.totalorder %s25, 1
      %p84 = por %p82, %p83
      %p85 = scmp.ne.s32.totalorder %s77, %s80
      %p86 = scmp.eq.s32.totalorder %s25, 0
      %p87 = por %p85, %p86
      %p88 = scmp.ne.s32.totalorder %s77, %s80
      %p89 = scmp.eq.s32.totalorder %s30, 1
      %p90 = por %p88, %p89
      %p91 = scmp.ne.s32.totalorder %s80, %s81
      %p92 = scmp.eq.s32.totalorder %s30, 0
      %p93 = por %p91, %p92
      %p94 = scmp.ne.s32.totalorder %s80, %s81
      %p95 = scmp.eq.s32.totalorder %s31, 1
      %p96 = por %p94, %p95
      %p98 = scmp.ne.s32.totalorder %s81, %s97
      %p99 = scmp.eq.s32.totalorder %s31, 0
      %p100 = por %p98, %p99
      %s101 = ssub.s32 %s32, %s44
      %s102 = ssub.s32 %s33, %s40
      %s103 = sor.u32 %s101, %s102
      %p104 = scmp.eq.s32.totalorder %s103, 0
      %s106 = sadd.s32 %s105, 1
      %s107 = scalar_select %p104, %s105, %s106
      %p110 = pneg %p104
      %p111 = scmp.eq.s32.totalorder %s25, 1
      %p112 = por %p110, %p111
      %p113 = scmp.ne.s32.totalorder %s105, %s108
      %p114 = scmp.eq.s32.totalorder %s25, 0
      %p115 = por %p113, %p114
      %p116 = scmp.ne.s32.totalorder %s105, %s108
      %p117 = scmp.eq.s32.totalorder %s30, 1
      %p118 = por %p116, %p117
      %p119 = scmp.ne.s32.totalorder %s108, %s109
      %p120 = scmp.eq.s32.totalorder %s30, 0
      %p121 = por %p119, %p120
      %p122 = scmp.ne.s32.totalorder %s108, %s109
      %p123 = scmp.eq.s32.totalorder %s31, 1
      %p124 = por %p122, %p123
      %p126 = scmp.ne.s32.totalorder %s109, %s125
      %p127 = scmp.eq.s32.totalorder %s31, 0
      %p128 = por %p126, %p127
      %s129 = ssub.s32 %s32, %s44
      %s130 = ssub.s32 %s33, %s40
      %s131 = sor.u32 %s129, %s130
      %p132 = scmp.eq.s32.totalorder %s131, 0
      %s134 = sadd.s32 %s133, 1
      %s135 = scalar_select %p132, %s133, %s134
      %p138 = pneg %p132
      %p139 = scmp.eq.s32.totalorder %s25, 1
      %p140 = por %p138, %p139
      %p141 = scmp.ne.s32.totalorder %s133, %s136
      %p142 = scmp.eq.s32.totalorder %s25, 0
      %p143 = por %p141, %p142
      %p144 = scmp.ne.s32.totalorder %s133, %s136
      %p145 = scmp.eq.s32.totalorder %s30, 1
      %p146 = por %p144, %p145
      %p147 = scmp.ne.s32.totalorder %s136, %s137
      %p148 = scmp.eq.s32.totalorder %s30, 0
      %p149 = por %p147, %p148
      %p150 = scmp.ne.s32.totalorder %s136, %s137
      %p151 = scmp.eq.s32.totalorder %s31, 1
      %p152 = por %p150, %p151
      %p154 = scmp.ne.s32.totalorder %s137, %s153
      %p155 = scmp.eq.s32.totalorder %s31, 0
      %p156 = por %p154, %p155
      %s157 = ssub.s32 %s32, %s44
      %s158 = ssub.s32 %s33, %s40
      %s159 = sor.u32 %s157, %s158
      %p160 = scmp.eq.s32.totalorder %s159, 0
      %s162 = sadd.s32 %s161, 1
      %s163 = scalar_select %p160, %s161, %s162
      %p166 = pneg %p160
      %p167 = scmp.eq.s32.totalorder %s25, 1
      %p168 = por %p166, %p167
      %p169 = scmp.ne.s32.totalorder %s161, %s164
      %p170 = scmp.eq.s32.totalorder %s25, 0
      %p171 = por %p169, %p170
      %p172 = scmp.ne.s32.totalorder %s161, %s164
      %p173 = scmp.eq.s32.totalorder %s30, 1
      %p174 = por %p172, %p173
      %p175 = scmp.ne.s32.totalorder %s164, %s165
      %p176 = scmp.eq.s32.totalorder %s30, 0
      %p177 = por %p175, %p176
      %p178 = scmp.ne.s32.totalorder %s164, %s165
      %p179 = scmp.eq.s32.totalorder %s31, 1
      %p180 = por %p178, %p179
      %p182 = scmp.ne.s32.totalorder %s165, %s181
      %p183 = scmp.eq.s32.totalorder %s31, 0
      %p184 = por %p182, %p183
      %s186 = sadd.s32 %s185, 1
      %p189 = scmp.eq.s32.totalorder %s25, 1
      %p190 = scmp.ne.s32.totalorder %s185, %s187
      %p191 = scmp.eq.s32.totalorder %s25, 0
      %p192 = por %p190, %p191
      %p193 = scmp.ne.s32.totalorder %s185, %s187
      %p194 = scmp.eq.s32.totalorder %s30, 1
      %p195 = por %p193, %p194
      %p196 = scmp.ne.s32.totalorder %s187, %s188
      %p197 = scmp.eq.s32.totalorder %s30, 0
      %p198 = por %p196, %p197
      %p199 = scmp.ne.s32.totalorder %s187, %s188
      %p200 = scmp.eq.s32.totalorder %s31, 1
      %p201 = por %p199, %p200
      %p203 = scmp.ne.s32.totalorder %s188, %s202
      %p204 = scmp.eq.s32.totalorder %s31, 0
      %p205 = por %p203, %p204
      %s206 = ssub.s32 %s32, %s44
      %s207 = ssub.s32 %s33, %s40
      %s208 = sor.u32 %s206, %s207
      %p209 = scmp.eq.s32.totalorder %s208, 0
      %s211 = sadd.s32 %s210, 1
      %s212 = scalar_select %p209, %s210, %s211
      %p215 = pneg %p209
      %p216 = scmp.eq.s32.totalorder %s25, 1
      %p217 = por %p215, %p216
      %p218 = scmp.ne.s32.totalorder %s210, %s213
      %p219 = scmp.eq.s32.totalorder %s25, 0
      %p220 = por %p218, %p219
      %p221 = scmp.ne.s32.totalorder %s210, %s213
      %p222 = scmp.eq.s32.totalorder %s30, 1
      %p223 = por %p221, %p222
      %p224 = scmp.ne.s32.totalorder %s213, %s214
      %p225 = scmp.eq.s32.totalorder %s30, 0
      %p226 = por %p224, %p225
      %p227 = scmp.ne.s32.totalorder %s213, %s214
      %p228 = scmp.eq.s32.totalorder %s31, 1
      %p229 = por %p227, %p228
      %p231 = scmp.ne.s32.totalorder %s214, %s230
      %p232 = scmp.eq.s32.totalorder %s31, 0
      %p233 = por %p231, %p232
      %p234 = scmp.le.s32.totalorder 1, %s25
      %p235 = scmp.lt.s32.totalorder %s25, 3
      %p236 = pnand %p234, %p235
      %p237 = pneg %p236
      // Predicated region
      $region9: #{tpu_custom_call.1} parent=5 // pred_check
        _
      $region10: #{tpu_custom_call.1} parent=5 // pred_check_branch
        %239 = sbr.rel (%p236) target = $region12
      $region11: #{tpu_custom_call.1} parent=5 // pred_region
        %s240 = ssub.s32 %s25, 1
        // Predicated region
        $region13: #{tpu_custom_call.1} parent=11 // pred_check
          %p241 = pneg %p198
        $region14: #{tpu_custom_call.1} parent=11 // pred_check_branch
          %243 = sbr.rel (%p241) target = $region16
        $region15: #{tpu_custom_call.1} parent=11 // pred_region
          %s245 = ssub.s32 512, 512
          %246 = vsyncadd [#allocation12], %s245
          %s247 = sshll.u32 [#allocation11], 4
          %s248 = int_to_ptr.vmem [resolvable:$true] %s247
          %253 = dma.hbm_to_vmem [thread:$0]  %s5, 512, %s248, [#allocation12], 128, 128, 8
        $region16: #{tpu_custom_call.1} parent=11 // pred_fallthru
          _
      $region12: #{tpu_custom_call.1} parent=5 // pred_fallthru
        _
      %p254 = scmp.lt.s32.totalorder %s25, 2
      // Predicated region
      $region17: #{tpu_custom_call.1} parent=5 // pred_check
        %p255 = pneg %p254
      $region18: #{tpu_custom_call.1} parent=5 // pred_check_branch
        %257 = sbr.rel (%p255) target = $region20
      $region19: #{tpu_custom_call.1} parent=5 // pred_region
        // Predicated region
        $region21: #{tpu_custom_call.1} parent=19 // pred_check
          %p258 = pneg %p59
        $region22: #{tpu_custom_call.1} parent=19 // pred_check_branch
          %260 = sbr.rel (%p258) target = $region24
        $region23: #{tpu_custom_call.1} parent=19 // pred_region
          %s261 = sand.u32 %s49, 1
          %s262 = scalar_lea.sflag [#allocation3], %s261
          %s263 = sand.u32 %s49, 1
          %s264 = smul.addr %s263, 2
          %s265 = scalar_lea.vmem [#allocation2], %s264
          %s266 = smul.u32 2, %s33
          %s268 = ssub.s32 32, 32
          %269 = vsyncadd %s262, %s268
          %s270 = smul.addr %s32, 2
          %s271 = sadd.s32 %s266, %s270
          %s272 = smul.addr %s271, 16
          %s273 = scalar_lea.hbm %s0, %s272
          %s275 = sshll.u32 %s265, 4
          %s276 = int_to_ptr.vmem [resolvable:$true] %s275
          %278 = dma.hbm_to_vmem [thread:$0]  %s273, 32, %s276, %s262
        $region24: #{tpu_custom_call.1} parent=19 // pred_fallthru
          _
        // Predicated region
        $region25: #{tpu_custom_call.1} parent=19 // pred_check
          %p279 = pneg %p87
        $region26: #{tpu_custom_call.1} parent=19 // pred_check_branch
          %281 = sbr.rel (%p279) target = $region28
        $region27: #{tpu_custom_call.1} parent=19 // pred_region
          %s282 = sand.u32 %s25, 1
          %s283 = scalar_lea.sflag [#allocation6], %s282
          %s284 = sand.u32 %s77, 1
          %s285 = smul.addr %s284, 16
          %s286 = scalar_lea.vmem [#allocation5], %s285
          %s287 = smul.u32 2, %s33
          %s289 = ssub.s32 256, 256
          %290 = vsyncadd %s283, %s289
          %s291 = smul.addr %s32, 2
          %s292 = sadd.s32 %s287, %s291
          %s293 = smul.addr %s292, 128
          %s294 = scalar_lea.hbm %s1, %s293
          %s296 = sshll.u32 %s286, 4
          %s297 = int_to_ptr.vmem [resolvable:$true] %s296
          %299 = dma.hbm_to_vmem [thread:$0]  %s294, 256, %s297, %s283
        $region28: #{tpu_custom_call.1} parent=19 // pred_fallthru
          _
        // Predicated region
        $region29: #{tpu_custom_call.1} parent=19 // pred_check
          %p300 = pneg %p115
        $region30: #{tpu_custom_call.1} parent=19 // pred_check_branch
          %302 = sbr.rel (%p300) target = $region32
        $region31: #{tpu_custom_call.1} parent=19 // pred_region
          %s303 = sand.u32 %s25, 1
          %s304 = scalar_lea.sflag [#allocation6], %s303
          %s305 = sand.u32 %s105, 1
          %s306 = smul.addr %s305, 16
          %s307 = scalar_lea.vmem [#allocation7], %s306
          %s308 = smul.u32 2, %s33
          %s310 = ssub.s32 256, 256
          %311 = vsyncadd %s304, %s310
          %s312 = smul.addr %s32, 2
          %s313 = sadd.s32 %s308, %s312
          %s314 = smul.addr %s313, 128
          %s315 = scalar_lea.hbm %s2, %s314
          %s317 = sshll.u32 %s307, 4
          %s318 = int_to_ptr.vmem [resolvable:$true] %s317
          %320 = dma.hbm_to_vmem [thread:$0]  %s315, 256, %s318, %s304
        $region32: #{tpu_custom_call.1} parent=19 // pred_fallthru
          _
        // Predicated region
        $region33: #{tpu_custom_call.1} parent=19 // pred_check
          %p321 = pneg %p143
        $region34: #{tpu_custom_call.1} parent=19 // pred_check_branch
          %323 = sbr.rel (%p321) target = $region36
        $region35: #{tpu_custom_call.1} parent=19 // pred_region
          %s324 = sand.u32 %s25, 1
          %s325 = scalar_lea.sflag [#allocation9], %s324
          %s326 = sand.u32 %s133, 1
          %s327 = smul.addr %s326, 16
          %s328 = scalar_lea.vmem [#allocation8], %s327
          %s329 = smul.u32 2, %s33
          %s331 = ssub.s32 256, 256
          %332 = vsyncadd %s325, %s331
          %s333 = smul.addr %s32, 2
          %s334 = sadd.s32 %s329, %s333
          %s335 = smul.addr %s334, 128
          %s336 = scalar_lea.hbm %s3, %s335
          %s338 = sshll.u32 %s328, 4
          %s339 = int_to_ptr.vmem [resolvable:$true] %s338
          %341 = dma.hbm_to_vmem [thread:$0]  %s336, 256, %s339, %s325
        $region36: #{tpu_custom_call.1} parent=19 // pred_fallthru
          _
        // Predicated region
        $region37: #{tpu_custom_call.1} parent=19 // pred_check
          %p342 = pneg %p171
        $region38: #{tpu_custom_call.1} parent=19 // pred_check_branch
          %344 = sbr.rel (%p342) target = $region40
        $region39: #{tpu_custom_call.1} parent=19 // pred_region
          %s345 = sand.u32 %s25, 1
          %s346 = scalar_lea.sflag [#allocation9], %s345
          %s347 = sand.u32 %s161, 1
          %s348 = smul.addr %s347, 16
          %s349 = scalar_lea.vmem [#allocation10], %s348
          %s350 = smul.u32 2, %s33
          %s352 = ssub.s32 256, 256
          %353 = vsyncadd %s346, %s352
          %s354 = smul.addr %s32, 2
          %s355 = sadd.s32 %s350, %s354
          %s356 = smul.addr %s355, 128
          %s357 = scalar_lea.hbm %s4, %s356
          %s359 = sshll.u32 %s349, 4
          %s360 = int_to_ptr.vmem [resolvable:$true] %s359
          %362 = dma.hbm_to_vmem [thread:$0]  %s357, 256, %s360, %s346
        $region40: #{tpu_custom_call.1} parent=19 // pred_fallthru
          _
      $region20: #{tpu_custom_call.1} parent=5 // pred_fallthru
        _
      %p363 = scmp.le.s32.totalorder 1, %s25
      %p364 = scmp.lt.s32.totalorder %s25, 3
      %p365 = pnand %p363, %p364
      %p366 = pneg %p365
      // Predicated region
      $region41: #{tpu_custom_call.1} parent=5 // pred_check
        _
      $region42: #{tpu_custom_call.1} parent=5 // pred_check_branch
        %368 = sbr.rel (%p365) target = $region44
      $region43: #{tpu_custom_call.1} parent=5 // pred_region
        %s369 = ssub.s32 %s25, 1
        %s370 = sand.u32 %s52, 1
        %s371 = scalar_lea.sflag [#allocation3], %s370
        %s372 = sand.u32 %s52, 1
        %s373 = smul.addr %s372, 2
        %s374 = scalar_lea.vmem [#allocation2], %s373
        // Predicated region
        $region45: #{tpu_custom_call.1} parent=43 // pred_check
          %p375 = pneg %p65
        $region46: #{tpu_custom_call.1} parent=43 // pred_check_branch
          %377 = sbr.rel (%p375) target = $region48
        $region47: #{tpu_custom_call.1} parent=43 // pred_region
          %378 = dma.done %s371, 32
        $region48: #{tpu_custom_call.1} parent=43 // pred_fallthru
          _
        %s379 = sand.u32 %s30, 1
        %s380 = scalar_lea.sflag [#allocation6], %s379
        %s381 = sand.u32 %s80, 1
        %s382 = smul.addr %s381, 16
        %s383 = scalar_lea.vmem [#allocation5], %s382
        // Predicated region
        $region49: #{tpu_custom_call.1} parent=43 // pred_check
          %p384 = pneg %p93
        $region50: #{tpu_custom_call.1} parent=43 // pred_check_branch
          %386 = sbr.rel (%p384) target = $region52
        $region51: #{tpu_custom_call.1} parent=43 // pred_region
          %387 = dma.done %s380, 256
        $region52: #{tpu_custom_call.1} parent=43 // pred_fallthru
          _
        %s388 = sand.u32 %s30, 1
        %s389 = scalar_lea.sflag [#allocation6], %s388
        %s390 = sand.u32 %s108, 1
        %s391 = smul.addr %s390, 16
        %s392 = scalar_lea.vmem [#allocation7], %s391
        // Predicated region
        $region53: #{tpu_custom_call.1} parent=43 // pred_check
          %p393 = pneg %p121
        $region54: #{tpu_custom_call.1} parent=43 // pred_check_branch
          %395 = sbr.rel (%p393) target = $region56
        $region55: #{tpu_custom_call.1} parent=43 // pred_region
          %396 = dma.done %s389, 256
        $region56: #{tpu_custom_call.1} parent=43 // pred_fallthru
          _
        %s397 = sand.u32 %s30, 1
        %s398 = scalar_lea.sflag [#allocation9], %s397
        %s399 = sand.u32 %s136, 1
        %s400 = smul.addr %s399, 16
        %s401 = scalar_lea.vmem [#allocation8], %s400
        // Predicated region
        $region57: #{tpu_custom_call.1} parent=43 // pred_check
          %p402 = pneg %p149
        $region58: #{tpu_custom_call.1} parent=43 // pred_check_branch
          %404 = sbr.rel (%p402) target = $region60
        $region59: #{tpu_custom_call.1} parent=43 // pred_region
          %405 = dma.done %s398, 256
        $region60: #{tpu_custom_call.1} parent=43 // pred_fallthru
          _
        %s406 = sand.u32 %s30, 1
        %s407 = scalar_lea.sflag [#allocation9], %s406
        %s408 = sand.u32 %s164, 1
        %s409 = smul.addr %s408, 16
        %s410 = scalar_lea.vmem [#allocation10], %s409
        // Predicated region
        $region61: #{tpu_custom_call.1} parent=43 // pred_check
          %p411 = pneg %p177
        $region62: #{tpu_custom_call.1} parent=43 // pred_check_branch
          %413 = sbr.rel (%p411) target = $region64
        $region63: #{tpu_custom_call.1} parent=43 // pred_region
          %414 = dma.done %s407, 256
        $region64: #{tpu_custom_call.1} parent=43 // pred_fallthru
          _
        // Predicated region
        $region65: #{tpu_custom_call.1} parent=43 // pred_check
          %p415 = pneg %p198
        $region66: #{tpu_custom_call.1} parent=43 // pred_check_branch
          %417 = sbr.rel (%p415) target = $region68
        $region67: #{tpu_custom_call.1} parent=43 // pred_region
          %418 = dma.done [#allocation12], 512
        $region68: #{tpu_custom_call.1} parent=43 // pred_fallthru
          _
        %s419 = sand.u32 %s52, 1
        %s420 = scalar_lea.sflag [#allocation3], %s419
        %s421 = sand.u32 %s52, 1
        %s422 = smul.addr %s421, 2
        %s423 = scalar_lea.vmem [#allocation2], %s422
        %p424 = pneg %p65
        %p425 = pneg %p62
        %s426 = sand.u32 %s30, 1
        %s427 = scalar_lea.sflag [#allocation6], %s426
        %s428 = sand.u32 %s80, 1
        %s429 = smul.addr %s428, 16
        %s430 = scalar_lea.vmem [#allocation5], %s429
        %p431 = pneg %p93
        %p432 = pneg %p90
        %s433 = sand.u32 %s30, 1
        %s434 = scalar_lea.sflag [#allocation6], %s433
        %s435 = sand.u32 %s108, 1
        %s436 = smul.addr %s435, 16
        %s437 = scalar_lea.vmem [#allocation7], %s436
        %p438 = pneg %p121
        %p439 = pneg %p118
        %s440 = sand.u32 %s30, 1
        %s441 = scalar_lea.sflag [#allocation9], %s440
        %s442 = sand.u32 %s136, 1
        %s443 = smul.addr %s442, 16
        %s444 = scalar_lea.vmem [#allocation8], %s443
        %p445 = pneg %p149
        %p446 = pneg %p146
        %s447 = sand.u32 %s30, 1
        %s448 = scalar_lea.sflag [#allocation9], %s447
        %s449 = sand.u32 %s164, 1
        %s450 = smul.addr %s449, 16
        %s451 = scalar_lea.vmem [#allocation10], %s450
        %p452 = pneg %p177
        %p453 = pneg %p174
        %p454 = pneg %p198
        %p455 = pneg %p195
        %p456 = pneg %p226
        %p457 = pneg %p223
        %s458 = sand.u32 %s213, 1
        %s459 = scalar_lea.sflag [#allocation4], %s458
        %s460 = sand.u32 %s213, 1
        %s461 = smul.addr %s460, 8
        %s462 = scalar_lea.vmem [#allocation13], %s461
        %s463 = smul.u32 2, %s35
        %s464 = smul.u32 2, %s35
        %s465 = smul.u32 2, %s35
        %s466 = smul.u32 2, %s35
        %s467 = smul.u32 2, %s35
        %v468 = vlaneseq
        %v469 = vshrl.u32 %v468, 7
        %v470 = vld [vmem:[%s401] sm:$0xff]
        %v471 = vld [vmem:[%s401 + $0x8] sm:$0xff]
        %v472 = vld [vmem:[%s410] sm:$0xff]
        %v473 = vld [vmem:[%s410 + $0x8] sm:$0xff]
        %v474 = vrot.slane %v470, 4
        %v475 = vmax.f32 %v470, %v474
        %v476 = vrot.slane %v475, 2
        %v477 = vmax.f32 %v475, %v476
        %v478 = vrot.slane %v477, 1
        %v479 = vmax.f32 %v477, %v478
        %v480 = vrot.slane %v471, 4
        %v481 = vmax.f32 %v471, %v480
        %v482 = vrot.slane %v481, 2
        %v483 = vmax.f32 %v481, %v482
        %v484 = vrot.slane %v483, 1
        %v485 = vmax.f32 %v483, %v484
        %v486 = vrot.slane %v472, 4
        %v487 = vmax.f32 %v472, %v486
        %v488 = vrot.slane %v487, 2
        %v489 = vmax.f32 %v487, %v488
        %v490 = vrot.slane %v489, 1
        %v491 = vmax.f32 %v489, %v490
        %v492 = vrot.slane %v473, 4
        %v493 = vmax.f32 %v473, %v492
        %v494 = vrot.slane %v493, 2
        %v495 = vmax.f32 %v493, %v494
        %v496 = vrot.slane %v495, 1
        %v497 = vmax.f32 %v495, %v496
        %v498 = vld [vmem:[%s374] sm:$0x3]
        %v499 = vsub.f32 %v470, %v479
        %v500 = vsub.f32 %v471, %v485
        %v501 = vmul.f32 %v499, 1.442695
        %v502 = vpow.pop %v501
        %v503 = vmul.f32 %v500, 1.442695
        %v504 = vpow.pop %v503
        %v505 = vrot.slane %v502, 4
        %v506 = vadd.f32 %v502, %v505
        %v507 = vrot.slane %v506, 2
        %v508 = vadd.f32 %v506, %v507
        %v509 = vrot.slane %v508, 1
        %v510 = vadd.f32 %v508, %v509
        %v511 = vrot.slane %v504, 4
        %v512 = vadd.f32 %v504, %v511
        %v513 = vrot.slane %v512, 2
        %v514 = vadd.f32 %v512, %v513
        %v515 = vrot.slane %v514, 1
        %v516 = vadd.f32 %v514, %v515
        %v517 = vsub.f32 %v472, %v491
        %v518 = vsub.f32 %v473, %v497
        %v519 = vmul.f32 %v517, 1.442695
        %v520 = vpow.pop %v519
        %v521 = vmul.f32 %v518, 1.442695
        %v522 = vpow.pop %v521
        %v523 = vrot.slane %v520, 4
        %v524 = vadd.f32 %v520, %v523
        %v525 = vrot.slane %v524, 2
        %v526 = vadd.f32 %v524, %v525
        %v527 = vrot.slane %v526, 1
        %v528 = vadd.f32 %v526, %v527
        %v529 = vrot.slane %v522, 4
        %v530 = vadd.f32 %v522, %v529
        %v531 = vrot.slane %v530, 2
        %v532 = vadd.f32 %v530, %v531
        %v533 = vrot.slane %v532, 1
        %v534 = vadd.f32 %v532, %v533
        %v535 = vmul.f32 %v510, 0.95
        %v536 = vmul.f32 %v516, 0.95
        %vm537 = vcmp.le.f32.partialorder %v535, 1.0
        %vm538 = vcmp.le.f32.partialorder %v536, 1.0
        %v539 = vmul.f32 %v528, 0.95
        %v540 = vmul.f32 %v534, 0.95
        %vm541 = vcmp.le.f32.partialorder %v539, 1.0
        %vm542 = vcmp.le.f32.partialorder %v540, 1.0
        %v543 = vlaneseq
        %v544 = vshrl.u32 %v543, 7
        %v545 = vsub.s32 0, %v544
        %v546 = vrot.slane %v498, %v545
        %v547 = vlaneseq
        %v548 = vshrl.u32 %v547, 7
        %v549 = vsub.s32 1, %v548
        %v550 = vrot.slane %v498, %v549
        %vm551 = vcmp.eq.s32.totalorder %v469, %v546
        %vm552 = vcmp.eq.s32.totalorder %v469, %v550
        %v553 = vsel %vm551, 1, 0
        %v554 = vsel %vm552, 1, 0
        %v555 = vcvt.s32.f32 %v553
        %v556 = vcvt.s32.f32 %v554
        %s557 = scalar_lea.vmem [#allocation11], 16
        %v558 = vld [vmem:[%s557] sm:$0xff]
        %vm559 = vcmask 64512
        %v561 = vsel %vm559, %v558, 0
        %563 = vmatprep.subr.mxu0 %v556
        %564 = vmatpush1.msra.mxu0 %v555
        %565 = vmatprep.subr.mxu0 0.0
        %566 = vmatpush1.msra.mxu0 0.0
        %567 = vmatprep.subr.mxu0 0.0
        %568 = vmatpush1.msra.mxu0 0.0
        %569 = vmatprep.subr.mxu0 0.0
        %570 = vmatpush1.msra.mxu0 0.0
        %571 = vmatprep.subr.mxu0 0.0
        %572 = vmatpush1.msra.mxu0 0.0
        %573 = vmatprep.subr.mxu0 0.0
        %574 = vmatpush1.msra.mxu0 0.0
        %575 = vmatprep.subr.mxu0 0.0
        %576 = vmatpush1.msra.mxu0 0.0
        %577 = vmatprep.subr.mxu0 0.0
        %578 = vmatpush1.msra.mxu0 0.0
        %579 = vmatprep.subr.mxu0 0.0
        %580 = vmatpush1.msra.mxu0 0.0
        %581 = vmatprep.subr.mxu0 0.0
        %582 = vmatpush1.msra.mxu0 0.0
        %583 = vmatprep.subr.mxu0 0.0
        %584 = vmatpush1.msra.mxu0 0.0
        %585 = vmatprep.subr.mxu0 0.0
        %586 = vmatpush1.msra.mxu0 0.0
        %587 = vmatprep.subr.mxu0 0.0
        %588 = vmatpush1.msra.mxu0 0.0
        %589 = vmatprep.subr.mxu0 0.0
        %590 = vmatpush1.msra.mxu0 0.0
        %591 = vmatprep.subr.mxu0 0.0
        %592 = vmatpush1.msra.mxu0 0.0
        %593 = vmatprep.subr.mxu0 0.0
        %594 = vmatpush1.msra.mxu0 0.0
        %595 = vmatprep.subr.mxu0 0.0
        %596 = vmatpush1.msra.mxu0 0.0
        %597 = vmatprep.subr.mxu0 0.0
        %598 = vmatpush1.msra.mxu0 0.0
        %599 = vmatprep.subr.mxu0 0.0
        %600 = vmatpush1.msra.mxu0 0.0
        %601 = vmatprep.subr.mxu0 0.0
        %602 = vmatpush1.msra.mxu0 0.0
        %603 = vmatprep.subr.mxu0 0.0
        %604 = vmatpush1.msra.mxu0 0.0
        %605 = vmatprep.subr.mxu0 0.0
        %606 = vmatpush1.msra.mxu0 0.0
        %607 = vmatprep.subr.mxu0 0.0
        %608 = vmatpush1.msra.mxu0 0.0
        %609 = vmatprep.subr.mxu0 0.0
        %610 = vmatpush1.msra.mxu0 0.0
        %611 = vmatprep.subr.mxu0 0.0
        %612 = vmatpush1.msra.mxu0 0.0
        %613 = vmatprep.subr.mxu0 0.0
        %614 = vmatpush1.msra.mxu0 0.0
        %615 = vmatprep.subr.mxu0 0.0
        %616 = vmatpush1.msra.mxu0 0.0
        %617 = vmatprep.subr.mxu0 0.0
        %618 = vmatpush1.msra.mxu0 0.0
        %619 = vmatprep.subr.mxu0 0.0
        %620 = vmatpush1.msra.mxu0 0.0
        %621 = vmatprep.subr.mxu0 0.0
        %622 = vmatpush1.msra.mxu0 0.0
        %623 = vmatprep.subr.mxu0 0.0
        %624 = vmatpush1.msra.mxu0 0.0
        %625 = vmatprep.subr.mxu0 0.0
        %626 = vmatpush1.msra.mxu0 0.0
        %627 = vmatprep.mubr.f32.mxu0 0.0
        %628 = vmatmul.mubr.f32.gmra.mrb[0].mxu0 %v561
        %v629 = vpop.f32.mrb[0].mxu0
        %v630 = vadd.f32 0.0, %v629
        %v631 = vpop.f32.mrb[0].mxu0
        %v632 = vadd.f32 0.0, %v631
        %633 = vdwg.mxu0
        %v634 = vadd.f32 %v470, %v630
        %v635 = vadd.f32 %v471, %v632
        %s636 = scalar_lea.vmem [#allocation11], 24
        %v637 = vld [vmem:[%s636] sm:$0xff]
        %v639 = vsel %vm559, %v637, 0
        %641 = vmatprep.subr.mxu0 %v556
        %642 = vmatpush1.msra.mxu0 %v555
        %643 = vmatprep.subr.mxu0 0.0
        %644 = vmatpush1.msra.mxu0 0.0
        %645 = vmatprep.subr.mxu0 0.0
        %646 = vmatpush1.msra.mxu0 0.0
        %647 = vmatprep.subr.mxu0 0.0
        %648 = vmatpush1.msra.mxu0 0.0
        %649 = vmatprep.subr.mxu0 0.0
        %650 = vmatpush1.msra.mxu0 0.0
        %651 = vmatprep.subr.mxu0 0.0
        %652 = vmatpush1.msra.mxu0 0.0
        %653 = vmatprep.subr.mxu0 0.0
        %654 = vmatpush1.msra.mxu0 0.0
        %655 = vmatprep.subr.mxu0 0.0
        %656 = vmatpush1.msra.mxu0 0.0
        %657 = vmatprep.subr.mxu0 0.0
        %658 = vmatpush1.msra.mxu0 0.0
        %659 = vmatprep.subr.mxu0 0.0
        %660 = vmatpush1.msra.mxu0 0.0
        %661 = vmatprep.subr.mxu0 0.0
        %662 = vmatpush1.msra.mxu0 0.0
        %663 = vmatprep.subr.mxu0 0.0
        %664 = vmatpush1.msra.mxu0 0.0
        %665 = vmatprep.subr.mxu0 0.0
        %666 = vmatpush1.msra.mxu0 0.0
        %667 = vmatprep.subr.mxu0 0.0
        %668 = vmatpush1.msra.mxu0 0.0
        %669 = vmatprep.subr.mxu0 0.0
        %670 = vmatpush1.msra.mxu0 0.0
        %671 = vmatprep.subr.mxu0 0.0
        %672 = vmatpush1.msra.mxu0 0.0
        %673 = vmatprep.subr.mxu0 0.0
        %674 = vmatpush1.msra.mxu0 0.0
        %675 = vmatprep.subr.mxu0 0.0
        %676 = vmatpush1.msra.mxu0 0.0
        %677 = vmatprep.subr.mxu0 0.0
        %678 = vmatpush1.msra.mxu0 0.0
        %679 = vmatprep.subr.mxu0 0.0
        %680 = vmatpush1.msra.mxu0 0.0
        %681 = vmatprep.subr.mxu0 0.0
        %682 = vmatpush1.msra.mxu0 0.0
        %683 = vmatprep.subr.mxu0 0.0
        %684 = vmatpush1.msra.mxu0 0.0
        %685 = vmatprep.subr.mxu0 0.0
        %686 = vmatpush1.msra.mxu0 0.0
        %687 = vmatprep.subr.mxu0 0.0
        %688 = vmatpush1.msra.mxu0 0.0
        %689 = vmatprep.subr.mxu0 0.0
        %690 = vmatpush1.msra.mxu0 0.0
        %691 = vmatprep.subr.mxu0 0.0
        %692 = vmatpush1.msra.mxu0 0.0
        %693 = vmatprep.subr.mxu0 0.0
        %694 = vmatpush1.msra.mxu0 0.0
        %695 = vmatprep.subr.mxu0 0.0
        %696 = vmatpush1.msra.mxu0 0.0
        %697 = vmatprep.subr.mxu0 0.0
        %698 = vmatpush1.msra.mxu0 0.0
        %699 = vmatprep.subr.mxu0 0.0
        %700 = vmatpush1.msra.mxu0 0.0
        %701 = vmatprep.subr.mxu0 0.0
        %702 = vmatpush1.msra.mxu0 0.0
        %703 = vmatprep.subr.mxu0 0.0
        %704 = vmatpush1.msra.mxu0 0.0
        %705 = vmatprep.mubr.f32.mxu0 0.0
        %706 = vmatmul.mubr.f32.gmra.mrb[0].mxu0 %v639
        %v707 = vpop.f32.mrb[0].mxu0
        %v708 = vadd.f32 0.0, %v707
        %v709 = vpop.f32.mrb[0].mxu0
        %v710 = vadd.f32 0.0, %v709
        %711 = vdwg.mxu0
        %v712 = vadd.f32 %v472, %v708
        %v713 = vadd.f32 %v473, %v710
        %v714 = vrot.slane %v634, 4
        %v715 = vmax.f32 %v634, %v714
        %v716 = vrot.slane %v715, 2
        %v717 = vmax.f32 %v715, %v716
        %v718 = vrot.slane %v717, 1
        %v719 = vmax.f32 %v717, %v718
        %v720 = vrot.slane %v635, 4
        %v721 = vmax.f32 %v635, %v720
        %v722 = vrot.slane %v721, 2
        %v723 = vmax.f32 %v721, %v722
        %v724 = vrot.slane %v723, 1
        %v725 = vmax.f32 %v723, %v724
        %vm726 = vcmp.eq.f32.partialorder %v634, %v719
        %vm727 = vcmp.eq.f32.partialorder %v635, %v725
        %v728 = vsel %vm726, %v469, 8
        %v729 = vsel %vm727, %v469, 8
        %v730 = vrot.slane %v728, 4
        %vm731 = vcmp.lt.s32.totalorder %v728, %v730
        %v732 = vsel %vm731, %v728, %v730
        %v733 = vrot.slane %v732, 2
        %vm734 = vcmp.lt.s32.totalorder %v732, %v733
        %v735 = vsel %vm734, %v732, %v733
        %v736 = vrot.slane %v735, 1
        %vm737 = vcmp.lt.s32.totalorder %v735, %v736
        %v738 = vsel %vm737, %v735, %v736
        %v739 = vrot.slane %v729, 4
        %vm740 = vcmp.lt.s32.totalorder %v729, %v739
        %v741 = vsel %vm740, %v729, %v739
        %v742 = vrot.slane %v741, 2
        %vm743 = vcmp.lt.s32.totalorder %v741, %v742
        %v744 = vsel %vm743, %v741, %v742
        %v745 = vrot.slane %v744, 1
        %vm746 = vcmp.lt.s32.totalorder %v744, %v745
        %v747 = vsel %vm746, %v744, %v745
        %v748 = vsel %vm537, %v738, 255
        %v749 = vsel %vm538, %v747, 255
        %v750 = vrot.slane %v712, 4
        %v751 = vmax.f32 %v712, %v750
        %v752 = vrot.slane %v751, 2
        %v753 = vmax.f32 %v751, %v752
        %v754 = vrot.slane %v753, 1
        %v755 = vmax.f32 %v753, %v754
        %v756 = vrot.slane %v713, 4
        %v757 = vmax.f32 %v713, %v756
        %v758 = vrot.slane %v757, 2
        %v759 = vmax.f32 %v757, %v758
        %v760 = vrot.slane %v759, 1
        %v761 = vmax.f32 %v759, %v760
        %vm762 = vcmp.eq.f32.partialorder %v712, %v755
        %vm763 = vcmp.eq.f32.partialorder %v713, %v761
        %v764 = vsel %vm762, %v469, 8
        %v765 = vsel %vm763, %v469, 8
        %v766 = vrot.slane %v764, 4
        %vm767 = vcmp.lt.s32.totalorder %v764, %v766
        %v768 = vsel %vm767, %v764, %v766
        %v769 = vrot.slane %v768, 2
        %vm770 = vcmp.lt.s32.totalorder %v768, %v769
        %v771 = vsel %vm770, %v768, %v769
        %v772 = vrot.slane %v771, 1
        %vm773 = vcmp.lt.s32.totalorder %v771, %v772
        %v774 = vsel %vm773, %v771, %v772
        %v775 = vrot.slane %v765, 4
        %vm776 = vcmp.lt.s32.totalorder %v765, %v775
        %v777 = vsel %vm776, %v765, %v775
        %v778 = vrot.slane %v777, 2
        %vm779 = vcmp.lt.s32.totalorder %v777, %v778
        %v780 = vsel %vm779, %v777, %v778
        %v781 = vrot.slane %v780, 1
        %vm782 = vcmp.lt.s32.totalorder %v780, %v781
        %v783 = vsel %vm782, %v780, %v781
        %v784 = vsel %vm541, %v774, 255
        %v785 = vsel %vm542, %v783, 255
        %v786 = vld [vmem:[%s383] sm:$0xff]
        %v787 = vld [vmem:[%s383 + $0x8] sm:$0xff]
        %v788 = vld [vmem:[%s392] sm:$0xff]
        %v789 = vld [vmem:[%s392 + $0x8] sm:$0xff]
        %v790 = vld [vmem:[#allocation11] sm:$0xff]
        %v792 = vsel %vm559, %v790, 0
        %794 = vmatprep.subr.mxu0 %v556
        %795 = vmatpush1.msra.mxu0 %v555
        %796 = vmatprep.subr.mxu0 0.0
        %797 = vmatpush1.msra.mxu0 0.0
        %798 = vmatprep.subr.mxu0 0.0
        %799 = vmatpush1.msra.mxu0 0.0
        %800 = vmatprep.subr.mxu0 0.0
        %801 = vmatpush1.msra.mxu0 0.0
        %802 = vmatprep.subr.mxu0 0.0
        %803 = vmatpush1.msra.mxu0 0.0
        %804 = vmatprep.subr.mxu0 0.0
        %805 = vmatpush1.msra.mxu0 0.0
        %806 = vmatprep.subr.mxu0 0.0
        %807 = vmatpush1.msra.mxu0 0.0
        %808 = vmatprep.subr.mxu0 0.0
        %809 = vmatpush1.msra.mxu0 0.0
        %810 = vmatprep.subr.mxu0 0.0
        %811 = vmatpush1.msra.mxu0 0.0
        %812 = vmatprep.subr.mxu0 0.0
        %813 = vmatpush1.msra.mxu0 0.0
        %814 = vmatprep.subr.mxu0 0.0
        %815 = vmatpush1.msra.mxu0 0.0
        %816 = vmatprep.subr.mxu0 0.0
        %817 = vmatpush1.msra.mxu0 0.0
        %818 = vmatprep.subr.mxu0 0.0
        %819 = vmatpush1.msra.mxu0 0.0
        %820 = vmatprep.subr.mxu0 0.0
        %821 = vmatpush1.msra.mxu0 0.0
        %822 = vmatprep.subr.mxu0 0.0
        %823 = vmatpush1.msra.mxu0 0.0
        %824 = vmatprep.subr.mxu0 0.0
        %825 = vmatpush1.msra.mxu0 0.0
        %826 = vmatprep.subr.mxu0 0.0
        %827 = vmatpush1.msra.mxu0 0.0
        %828 = vmatprep.subr.mxu0 0.0
        %829 = vmatpush1.msra.mxu0 0.0
        %830 = vmatprep.subr.mxu0 0.0
        %831 = vmatpush1.msra.mxu0 0.0
        %832 = vmatprep.subr.mxu0 0.0
        %833 = vmatpush1.msra.mxu0 0.0
        %834 = vmatprep.subr.mxu0 0.0
        %835 = vmatpush1.msra.mxu0 0.0
        %836 = vmatprep.subr.mxu0 0.0
        %837 = vmatpush1.msra.mxu0 0.0
        %838 = vmatprep.subr.mxu0 0.0
        %839 = vmatpush1.msra.mxu0 0.0
        %840 = vmatprep.subr.mxu0 0.0
        %841 = vmatpush1.msra.mxu0 0.0
        %842 = vmatprep.subr.mxu0 0.0
        %843 = vmatpush1.msra.mxu0 0.0
        %844 = vmatprep.subr.mxu0 0.0
        %845 = vmatpush1.msra.mxu0 0.0
        %846 = vmatprep.subr.mxu0 0.0
        %847 = vmatpush1.msra.mxu0 0.0
        %848 = vmatprep.subr.mxu0 0.0
        %849 = vmatpush1.msra.mxu0 0.0
        %850 = vmatprep.subr.mxu0 0.0
        %851 = vmatpush1.msra.mxu0 0.0
        %852 = vmatprep.subr.mxu0 0.0
        %853 = vmatpush1.msra.mxu0 0.0
        %854 = vmatprep.subr.mxu0 0.0
        %855 = vmatpush1.msra.mxu0 0.0
        %856 = vmatprep.subr.mxu0 0.0
        %857 = vmatpush1.msra.mxu0 0.0
        %858 = vmatprep.mubr.f32.mxu0 0.0
        %859 = vmatmul.mubr.f32.gmra.mrb[0].mxu0 %v792
        %v860 = vpop.f32.mrb[0].mxu0
        %v861 = vadd.f32 0.0, %v860
        %v862 = vpop.f32.mrb[0].mxu0
        %v863 = vadd.f32 0.0, %v862
        %864 = vdwg.mxu0
        %v865 = vadd.f32 %v786, %v861
        %v866 = vadd.f32 %v787, %v863
        %s867 = scalar_lea.vmem [#allocation11], 8
        %v868 = vld [vmem:[%s867] sm:$0xff]
        %v870 = vsel %vm559, %v868, 0
        %872 = vmatprep.subr.mxu0 %v556
        %873 = vmatpush1.msra.mxu0 %v555
        %874 = vmatprep.subr.mxu0 0.0
        %875 = vmatpush1.msra.mxu0 0.0
        %876 = vmatprep.subr.mxu0 0.0
        %877 = vmatpush1.msra.mxu0 0.0
        %878 = vmatprep.subr.mxu0 0.0
        %879 = vmatpush1.msra.mxu0 0.0
        %880 = vmatprep.subr.mxu0 0.0
        %881 = vmatpush1.msra.mxu0 0.0
        %882 = vmatprep.subr.mxu0 0.0
        %883 = vmatpush1.msra.mxu0 0.0
        %884 = vmatprep.subr.mxu0 0.0
        %885 = vmatpush1.msra.mxu0 0.0
        %886 = vmatprep.subr.mxu0 0.0
        %887 = vmatpush1.msra.mxu0 0.0
        %888 = vmatprep.subr.mxu0 0.0
        %889 = vmatpush1.msra.mxu0 0.0
        %890 = vmatprep.subr.mxu0 0.0
        %891 = vmatpush1.msra.mxu0 0.0
        %892 = vmatprep.subr.mxu0 0.0
        %893 = vmatpush1.msra.mxu0 0.0
        %894 = vmatprep.subr.mxu0 0.0
        %895 = vmatpush1.msra.mxu0 0.0
        %896 = vmatprep.subr.mxu0 0.0
        %897 = vmatpush1.msra.mxu0 0.0
        %898 = vmatprep.subr.mxu0 0.0
        %899 = vmatpush1.msra.mxu0 0.0
        %900 = vmatprep.subr.mxu0 0.0
        %901 = vmatpush1.msra.mxu0 0.0
        %902 = vmatprep.subr.mxu0 0.0
        %903 = vmatpush1.msra.mxu0 0.0
        %904 = vmatprep.subr.mxu0 0.0
        %905 = vmatpush1.msra.mxu0 0.0
        %906 = vmatprep.subr.mxu0 0.0
        %907 = vmatpush1.msra.mxu0 0.0
        %908 = vmatprep.subr.mxu0 0.0
        %909 = vmatpush1.msra.mxu0 0.0
        %910 = vmatprep.subr.mxu0 0.0
        %911 = vmatpush1.msra.mxu0 0.0
        %912 = vmatprep.subr.mxu0 0.0
        %913 = vmatpush1.msra.mxu0 0.0
        %914 = vmatprep.subr.mxu0 0.0
        %915 = vmatpush1.msra.mxu0 0.0
        %916 = vmatprep.subr.mxu0 0.0
        %917 = vmatpush1.msra.mxu0 0.0
        %918 = vmatprep.subr.mxu0 0.0
        %919 = vmatpush1.msra.mxu0 0.0
        %920 = vmatprep.subr.mxu0 0.0
        %921 = vmatpush1.msra.mxu0 0.0
        %922 = vmatprep.subr.mxu0 0.0
        %923 = vmatpush1.msra.mxu0 0.0
        %924 = vmatprep.subr.mxu0 0.0
        %925 = vmatpush1.msra.mxu0 0.0
        %926 = vmatprep.subr.mxu0 0.0
        %927 = vmatpush1.msra.mxu0 0.0
        %928 = vmatprep.subr.mxu0 0.0
        %929 = vmatpush1.msra.mxu0 0.0
        %930 = vmatprep.subr.mxu0 0.0
        %931 = vmatpush1.msra.mxu0 0.0
        %932 = vmatprep.subr.mxu0 0.0
        %933 = vmatpush1.msra.mxu0 0.0
        %934 = vmatprep.subr.mxu0 0.0
        %935 = vmatpush1.msra.mxu0 0.0
        %936 = vmatprep.mubr.f32.mxu0 0.0
        %937 = vmatmul.mubr.f32.gmra.mrb[0].mxu0 %v870
        %v938 = vpop.f32.mrb[0].mxu0
        %v939 = vadd.f32 0.0, %v938
        %v940 = vpop.f32.mrb[0].mxu0
        %v941 = vadd.f32 0.0, %v940
        %942 = vdwg.mxu0
        %v943 = vadd.f32 %v788, %v939
        %v944 = vadd.f32 %v789, %v941
        %v945 = vrot.slane %v865, 4
        %v946 = vmax.f32 %v865, %v945
        %v947 = vrot.slane %v946, 2
        %v948 = vmax.f32 %v946, %v947
        %v949 = vrot.slane %v948, 1
        %v950 = vmax.f32 %v948, %v949
        %v951 = vrot.slane %v866, 4
        %v952 = vmax.f32 %v866, %v951
        %v953 = vrot.slane %v952, 2
        %v954 = vmax.f32 %v952, %v953
        %v955 = vrot.slane %v954, 1
        %v956 = vmax.f32 %v954, %v955
        %v957 = vrot.slane %v943, 4
        %v958 = vmax.f32 %v943, %v957
        %v959 = vrot.slane %v958, 2
        %v960 = vmax.f32 %v958, %v959
        %v961 = vrot.slane %v960, 1
        %v962 = vmax.f32 %v960, %v961
        %v963 = vrot.slane %v944, 4
        %v964 = vmax.f32 %v944, %v963
        %v965 = vrot.slane %v964, 2
        %v966 = vmax.f32 %v964, %v965
        %v967 = vrot.slane %v966, 1
        %v968 = vmax.f32 %v966, %v967
        %vm969 = vcmp.eq.f32.partialorder %v865, %v950
        %vm970 = vcmp.eq.f32.partialorder %v866, %v956
        %v971 = vsel %vm969, %v469, 8
        %v972 = vsel %vm970, %v469, 8
        %v973 = vrot.slane %v971, 4
        %vm974 = vcmp.lt.s32.totalorder %v971, %v973
        %v975 = vsel %vm974, %v971, %v973
        %v976 = vrot.slane %v975, 2
        %vm977 = vcmp.lt.s32.totalorder %v975, %v976
        %v978 = vsel %vm977, %v975, %v976
        %v979 = vrot.slane %v978, 1
        %vm980 = vcmp.lt.s32.totalorder %v978, %v979
        %v981 = vsel %vm980, %v978, %v979
        %v982 = vrot.slane %v972, 4
        %vm983 = vcmp.lt.s32.totalorder %v972, %v982
        %v984 = vsel %vm983, %v972, %v982
        %v985 = vrot.slane %v984, 2
        %vm986 = vcmp.lt.s32.totalorder %v984, %v985
        %v987 = vsel %vm986, %v984, %v985
        %v988 = vrot.slane %v987, 1
        %vm989 = vcmp.lt.s32.totalorder %v987, %v988
        %v990 = vsel %vm989, %v987, %v988
        %vm991 = vcmp.eq.f32.partialorder %v943, %v962
        %vm992 = vcmp.eq.f32.partialorder %v944, %v968
        %v993 = vsel %vm991, %v469, 8
        %v994 = vsel %vm992, %v469, 8
        %v995 = vrot.slane %v993, 4
        %vm996 = vcmp.lt.s32.totalorder %v993, %v995
        %v997 = vsel %vm996, %v993, %v995
        %v998 = vrot.slane %v997, 2
        %vm999 = vcmp.lt.s32.totalorder %v997, %v998
        %v1000 = vsel %vm999, %v997, %v998
        %v1001 = vrot.slane %v1000, 1
        %vm1002 = vcmp.lt.s32.totalorder %v1000, %v1001
        %v1003 = vsel %vm1002, %v1000, %v1001
        %v1004 = vrot.slane %v994, 4
        %vm1005 = vcmp.lt.s32.totalorder %v994, %v1004
        %v1006 = vsel %vm1005, %v994, %v1004
        %v1007 = vrot.slane %v1006, 2
        %vm1008 = vcmp.lt.s32.totalorder %v1006, %v1007
        %v1009 = vsel %vm1008, %v1006, %v1007
        %v1010 = vrot.slane %v1009, 1
        %vm1011 = vcmp.lt.s32.totalorder %v1009, %v1010
        %v1012 = vsel %vm1011, %v1009, %v1010
        %v1013 = vsub.f32 %v865, %v950
        %v1014 = vsub.f32 %v866, %v956
        %v1015 = vmul.f32 %v1013, 1.442695
        %v1016 = vpow.pop %v1015
        %v1017 = vmul.f32 %v1014, 1.442695
        %v1018 = vpow.pop %v1017
        %v1019 = vrot.slane %v1016, 4
        %v1020 = vadd.f32 %v1016, %v1019
        %v1021 = vrot.slane %v1020, 2
        %v1022 = vadd.f32 %v1020, %v1021
        %v1023 = vrot.slane %v1022, 1
        %v1024 = vadd.f32 %v1022, %v1023
        %v1025 = vrot.slane %v1018, 4
        %v1026 = vadd.f32 %v1018, %v1025
        %v1027 = vrot.slane %v1026, 2
        %v1028 = vadd.f32 %v1026, %v1027
        %v1029 = vrot.slane %v1028, 1
        %v1030 = vadd.f32 %v1028, %v1029
        %v1031 = vlog2.pop %v1024
        %v1032 = vmul.f32 %v1031, 0.6931472
        %v1033 = vlog2.pop %v1030
        %v1034 = vmul.f32 %v1033, 0.6931472
        %v1035 = vadd.f32 %v1032, %v950
        %v1036 = vadd.f32 %v1034, %v956
        %v1037 = vsub.f32 %v943, %v962
        %v1038 = vsub.f32 %v944, %v968
        %v1039 = vmul.f32 %v1037, 1.442695
        %v1040 = vpow.pop %v1039
        %v1041 = vmul.f32 %v1038, 1.442695
        %v1042 = vpow.pop %v1041
        %v1043 = vrot.slane %v1040, 4
        %v1044 = vadd.f32 %v1040, %v1043
        %v1045 = vrot.slane %v1044, 2
        %v1046 = vadd.f32 %v1044, %v1045
        %v1047 = vrot.slane %v1046, 1
        %v1048 = vadd.f32 %v1046, %v1047
        %v1049 = vrot.slane %v1042, 4
        %v1050 = vadd.f32 %v1042, %v1049
        %v1051 = vrot.slane %v1050, 2
        %v1052 = vadd.f32 %v1050, %v1051
        %v1053 = vrot.slane %v1052, 1
        %v1054 = vadd.f32 %v1052, %v1053
        %v1055 = vlog2.pop %v1048
        %v1056 = vmul.f32 %v1055, 0.6931472
        %v1057 = vlog2.pop %v1054
        %v1058 = vmul.f32 %v1057, 0.6931472
        %v1059 = vadd.f32 %v1056, %v962
        %v1060 = vadd.f32 %v1058, %v968
        %vm1061 = vcmp.ne.s32.totalorder %v784, 255
        %vm1062 = vcmp.ne.s32.totalorder %v785, 255
        %vm1063 = vcmp.eq.s32.totalorder %v469, %v784
        %vm1064 = vcmp.eq.s32.totalorder %v469, %v785
        %v1065 = vsel %vm1063, %v865, 0.0
        %v1066 = vsel %vm1064, %v866, 0.0
        %v1067 = vrot.slane %v1065, 4
        %v1068 = vadd.f32 %v1065, %v1067
        %v1069 = vrot.slane %v1068, 2
        %v1070 = vadd.f32 %v1068, %v1069
        %v1071 = vrot.slane %v1070, 1
        %v1072 = vadd.f32 %v1070, %v1071
        %v1073 = vrot.slane %v1066, 4
        %v1074 = vadd.f32 %v1066, %v1073
        %v1075 = vrot.slane %v1074, 2
        %v1076 = vadd.f32 %v1074, %v1075
        %v1077 = vrot.slane %v1076, 1
        %v1078 = vadd.f32 %v1076, %v1077
        %v1079 = vsub.f32 %v1035, %v1072
        %v1080 = vsub.f32 %v1036, %v1078
        %v1081 = vsel %vm1061, %v1079, 0.0
        %v1082 = vsel %vm1062, %v1080, 0.0
        %v1083 = vadd.f32 %v1081, %v1082
        %v1084 = vsel %vm1061, 1, 0
        %v1085 = vsel %vm1062, 1, 0
        %v1086 = vcvt.s32.f32 %v1084
        %v1087 = vcvt.s32.f32 %v1085
        %v1088 = vadd.f32 %v1086, %v1087
        %vm1089 = vcmp.ne.s32.totalorder %v748, 255
        %vm1090 = vcmp.ne.s32.totalorder %v749, 255
        %vm1091 = vcmp.eq.s32.totalorder %v469, %v748
        %vm1092 = vcmp.eq.s32.totalorder %v469, %v749
        %v1093 = vsel %vm1091, %v943, 0.0
        %v1094 = vsel %vm1092, %v944, 0.0
        %v1095 = vrot.slane %v1093, 4
        %v1096 = vadd.f32 %v1093, %v1095
        %v1097 = vrot.slane %v1096, 2
        %v1098 = vadd.f32 %v1096, %v1097
        %v1099 = vrot.slane %v1098, 1
        %v1100 = vadd.f32 %v1098, %v1099
        %v1101 = vrot.slane %v1094, 4
        %v1102 = vadd.f32 %v1094, %v1101
        %v1103 = vrot.slane %v1102, 2
        %v1104 = vadd.f32 %v1102, %v1103
        %v1105 = vrot.slane %v1104, 1
        %v1106 = vadd.f32 %v1104, %v1105
        %v1107 = vsub.f32 %v1059, %v1100
        %v1108 = vsub.f32 %v1060, %v1106
        %v1109 = vsel %vm1089, %v1107, 0.0
        %v1110 = vsel %vm1090, %v1108, 0.0
        %v1111 = vadd.f32 %v1109, %v1110
        %v1112 = vsel %vm1089, 1, 0
        %v1113 = vsel %vm1090, 1, 0
        %v1114 = vcvt.s32.f32 %v1112
        %v1115 = vcvt.s32.f32 %v1113
        %v1116 = vadd.f32 %v1114, %v1115
        %vm1117 = vcmp.ne.s32.totalorder %v1003, 255
        %vm1118 = vcmp.ne.s32.totalorder %v1012, 255
        %vm1119 = vcmp.eq.s32.totalorder %v469, %v1003
        %vm1120 = vcmp.eq.s32.totalorder %v469, %v1012
        %v1121 = vsel %vm1119, %v865, 0.0
        %v1122 = vsel %vm1120, %v866, 0.0
        %v1123 = vrot.slane %v1121, 4
        %v1124 = vadd.f32 %v1121, %v1123
        %v1125 = vrot.slane %v1124, 2
        %v1126 = vadd.f32 %v1124, %v1125
        %v1127 = vrot.slane %v1126, 1
        %v1128 = vadd.f32 %v1126, %v1127
        %v1129 = vrot.slane %v1122, 4
        %v1130 = vadd.f32 %v1122, %v1129
        %v1131 = vrot.slane %v1130, 2
        %v1132 = vadd.f32 %v1130, %v1131
        %v1133 = vrot.slane %v1132, 1
        %v1134 = vadd.f32 %v1132, %v1133
        %v1135 = vsub.f32 %v1035, %v1128
        %v1136 = vsub.f32 %v1036, %v1134
        %v1137 = vsel %vm1117, %v1135, 0.0
        %v1138 = vsel %vm1118, %v1136, 0.0
        %v1139 = vadd.f32 %v1137, %v1138
        %v1140 = vsel %vm1117, 1, 0
        %v1141 = vsel %vm1118, 1, 0
        %v1142 = vcvt.s32.f32 %v1140
        %v1143 = vcvt.s32.f32 %v1141
        %v1144 = vadd.f32 %v1142, %v1143
        %vm1145 = vcmp.ne.s32.totalorder %v981, 255
        %vm1146 = vcmp.ne.s32.totalorder %v990, 255
        %vm1147 = vcmp.eq.s32.totalorder %v469, %v981
        %vm1148 = vcmp.eq.s32.totalorder %v469, %v990
        %v1149 = vsel %vm1147, %v943, 0.0
        %v1150 = vsel %vm1148, %v944, 0.0
        %v1151 = vrot.slane %v1149, 4
        %v1152 = vadd.f32 %v1149, %v1151
        %v1153 = vrot.slane %v1152, 2
        %v1154 = vadd.f32 %v1152, %v1153
        %v1155 = vrot.slane %v1154, 1
        %v1156 = vadd.f32 %v1154, %v1155
        %v1157 = vrot.slane %v1150, 4
        %v1158 = vadd.f32 %v1150, %v1157
        %v1159 = vrot.slane %v1158, 2
        %v1160 = vadd.f32 %v1158, %v1159
        %v1161 = vrot.slane %v1160, 1
        %v1162 = vadd.f32 %v1160, %v1161
        %v1163 = vsub.f32 %v1059, %v1156
        %v1164 = vsub.f32 %v1060, %v1162
        %v1165 = vsel %vm1145, %v1163, 0.0
        %v1166 = vsel %vm1146, %v1164, 0.0
        %v1167 = vadd.f32 %v1165, %v1166
        %v1168 = vsel %vm1145, 1, 0
        %v1169 = vsel %vm1146, 1, 0
        %v1170 = vcvt.s32.f32 %v1168
        %v1171 = vcvt.s32.f32 %v1169
        %v1172 = vadd.f32 %v1170, %v1171
        %vm1173 = vcmask 1040384
        %v1174 = vsel %vm1173, %v1083, %v1111
        %vm1175 = vcmask 1041408
        %v1176 = vsel %vm1175, %v1174, %v1139
        %vm1177 = vcmask 1042432
        %v1178 = vsel %vm1177, %v1176, %v1167
        %vm1179 = vcmask 1043456
        %v1180 = vsel %vm1179, %v1178, %v1088
        %vm1181 = vcmask 1044480
        %v1182 = vsel %vm1181, %v1180, %v1116
        %vm1183 = vcmask 1045504
        %v1184 = vsel %vm1183, %v1182, %v1144
        %vm1185 = vcmask 1046528
        %v1186 = vsel %vm1185, %v1184, %v1172
        %1187 = vst [vmem:[%s462] sm:$0xff] %v1186
        %s1188 = sand.u32 %s213, 1
        %s1189 = scalar_lea.sflag [#allocation4], %s1188
        %s1190 = sand.u32 %s213, 1
        %s1191 = smul.addr %s1190, 8
        %s1192 = scalar_lea.vmem [#allocation13], %s1191
        // Predicated region
        $region69: #{tpu_custom_call.1} parent=43 // pred_check
          %p1193 = pneg %p223
        $region70: #{tpu_custom_call.1} parent=43 // pred_check_branch
          %1195 = sbr.rel (%p1193) target = $region72
        $region71: #{tpu_custom_call.1} parent=43 // pred_region
          %s1197 = ssub.s32 128, 128
          %1198 = vsyncadd %s1189, %s1197
          %s1199 = sadd.s32 %s35, %s34
          %s1200 = smul.addr %s1199, 128
          %s1201 = scalar_lea.hbm %s6, %s1200
          %s1203 = sshll.u32 %s1192, 4
          %s1204 = int_to_ptr.vmem [resolvable:$true] %s1203
          %1206 = dma.vmem_to_hbm [thread:$0]  %s1204, 128, %s1201, %s1189
        $region72: #{tpu_custom_call.1} parent=43 // pred_fallthru
          _
      $region44: #{tpu_custom_call.1} parent=5 // pred_fallthru
        _
      %p1207 = scmp.le.s32.totalorder 2, %s25
      // Predicated region
      $region73: #{tpu_custom_call.1} parent=5 // pred_check
        %p1208 = pneg %p1207
      $region74: #{tpu_custom_call.1} parent=5 // pred_check_branch
        %1210 = sbr.rel (%p1208) target = $region76
      $region75: #{tpu_custom_call.1} parent=5 // pred_region
        %s1211 = ssub.s32 %s25, 2
        // Predicated region
        $region77: #{tpu_custom_call.1} parent=75 // pred_check
          %p1212 = pneg %p229
        $region78: #{tpu_custom_call.1} parent=75 // pred_check_branch
          %1214 = sbr.rel (%p1212) target = $region80
        $region79: #{tpu_custom_call.1} parent=75 // pred_region
          %s1215 = sand.u32 %s214, 1
          %s1216 = scalar_lea.sflag [#allocation4], %s1215
          %s1217 = sand.u32 %s214, 1
          %s1218 = smul.addr %s1217, 8
          %s1219 = scalar_lea.vmem [#allocation13], %s1218
          %1220 = dma.done %s1216, 128
        $region80: #{tpu_custom_call.1} parent=75 // pred_fallthru
          _
      $region76: #{tpu_custom_call.1} parent=5 // pred_fallthru
        _
    $region6: #{tpu_custom_call.1} parent=1 // loop_footer
      %s29 = sadd.s32 1, %s25
    $region7: #{tpu_custom_call.1} parent=1 // loop_footer_branch
      %24 = sbr.rel target = $region3
    $region8: #{tpu_custom_call.1} parent=1 // loop_exit
      _
    %1221 = vsyncpa [#allocation3], 1
    %s1222 = scalar_lea.sflag [#allocation3], 1
    %1223 = vsyncpa %s1222, 1
    %1224 = vsyncpa [#allocation6], 1
    %s1225 = scalar_lea.sflag [#allocation6], 1
    %1226 = vsyncpa %s1225, 1
    %1227 = vsyncpa [#allocation9], 1
    %s1228 = scalar_lea.sflag [#allocation9], 1
    %1229 = vsyncpa %s1228, 1
    %1230 = vsyncpa [#allocation12], 1
    %1231 = vsyncpa [#allocation4], 1
    %s1232 = scalar_lea.sflag [#allocation4], 1
    %1233 = vsyncpa %s1232, 1

</llo_original>
